<compile_context>
chip_gen: v7x
topology: tpu7x:2x2x1
jax: 0.10.0
libtpu: 0.0.40
codegen_flags: <defaults>
</compile_context>

<pallas_src>
import math

import numpy as np
import jax
import jax.numpy as jnp
from jax import lax
from jax.experimental import pallas as pl
from jax.experimental.pallas import tpu as pltpu


# ----------------------------- Pallas kernel ------------------------------ #

def _roi_block_kernel(img_ref, ayf_ref, ax_ref, f_ref, o_ref):
    """One grid step = RB ROIs x one channel tile of one image.

    img_ref : SMEM (nblocks,) int32  - only used by the index_maps
    ayf_ref : (RB*P, H)              - row-interp matrices, ROIs folded into M
    ax_ref  : (RB, P, W)             - col-interp matrices
    f_ref   : (1, H, CB*W)           - feature tile, f[h, c*W + w]
    o_ref   : (RB, P, CB*P)          - o[r, q, c*P + p] = out[r, c, p, q]
    """
    del img_ref  # consumed by the index_maps only
    rb, p, w = ax_ref.shape
    cb = f_ref.shape[2] // w

    # (1) H-contraction for the whole ROI block in a single wide MXU matmul:
    #     M = RB*P (ROIs folded), K = H, N = CB*W (channels folded).
    t = jnp.dot(ayf_ref[...], f_ref[0],
                preferred_element_type=jnp.float32)          # (RB*P, CB*W)

    # (2) Regroup channels from the lane axis to the sublane axis once per
    #     step: (RB*P, CB*W) -> (CB, RB*P, W).  Static lane slices + leading
    #     dim stack only (layout-friendly ops).
    t = jnp.stack([t[:, c * w:(c + 1) * w] for c in range(cb)], axis=0)
    t = t.astype(ax_ref.dtype)

    # (3) W-contraction per ROI with channels folded into the lane axis of the
    #     result: (P, W) x (CB*P, W)^T -> (P, CB*P)  => lane-dense stores.
    for r in range(rb):
        t_r = t[:, r * p:(r + 1) * p, :].reshape(cb * p, w)  # (CB*P, W)
        res = lax.dot_general(
            ax_ref[r], t_r,
            dimension_numbers=(((1,), (1,)), ((), ())),
            preferred_element_type=jnp.float32)              # (P, CB*P)
        o_ref[r] = res.astype(o_ref.dtype)


def _roi_align_batched(img_ids, ayf, ax, feats2, *, pooled, roi_block,
                       channel_tile):
    """img_ids: (nblocks,) i32; ayf: (nblocks*RB*P, H); ax: (nblocks*RB, P, W);
    feats2: (N, H, C*W)  ->  (nblocks*RB, P, C*P) float32."""
    nblocks = int(img_ids.shape[0])
    P, RB, CB = pooled, roi_block, channel_tile
    rpad = nblocks * RB
    _, H, CW = feats2.shape
    W = ax.shape[2]
    C = CW // W
    n_ctiles = C // CB
    itemsize = jnp.dtype(feats2.dtype).itemsize

    # Explicit VMEM budget (v7x has only 64 MiB physical / 32 MiB default scoped).
    blk_bytes = ((RB * P * H + RB * P * W) * itemsize
                 + H * CB * W * itemsize
                 + RB * P * CB * P * 4)
    interm_bytes = 3 * RB * P * CB * W * 4
    vmem_limit = int(min(48 * 2**20,
                         max(16 * 2**20, 2 * blk_bytes + interm_bytes + (2 << 20))))

    return pl.pallas_call(
        _roi_block_kernel,
        out_shape=jax.ShapeDtypeStruct((rpad, P, C * P), jnp.float32),
        grid_spec=pltpu.PrefetchScalarGridSpec(
            num_scalar_prefetch=1,
            grid=(nblocks, n_ctiles),
            in_specs=[
                pl.BlockSpec((RB * P, H), lambda b, cb, img: (b, 0)),
                pl.BlockSpec((RB, P, W), lambda b, cb, img: (b, 0, 0)),
                # Feature tile picked by the per-block image id (scalar prefetch).
                pl.BlockSpec((1, H, CB * W), lambda b, cb, img: (img[b], 0, cb)),
            ],
            out_specs=pl.BlockSpec((RB, P, CB * P), lambda b, cb, img: (b, 0, cb)),
        ),
        compiler_params=pltpu.CompilerParams(
            # ROI blocks are independent -> shard across v7x's two TensorCores.
            dimension_semantics=("parallel", "arbitrary"),
            vmem_limit_bytes=vmem_limit),
    )(img_ids, ayf, ax, feats2)


# --------------------------- host-side glue -------------------------------- #

def _squared_box_from_mask(seg_mask):
    """Mirror crop_roi's box computation (square the bbox, (x1,y1,x2,y2))."""
    idx = np.argwhere(seg_mask)                      # rows of (row, col)
    x_1, y_1 = idx.min(axis=0)                       # torch naming: x=row, y=col
    x_2, y_2 = idx.max(axis=0)
    x_len = int(x_2 - x_1)
    y_len = int(y_2 - y_1)
    diff = abs(x_len - y_len)
    if x_len > y_len:
        y_1 -= diff // 2
        y_2 += diff // 2
    else:
        x_1 -= diff // 2
        x_2 += diff // 2
    # roi_align box convention is (x1, y1, x2, y2) with x = column axis.
    return float(y_1), float(x_1), float(y_2), float(x_2)


def _interp_matrix(start, roi_len, pooled, size):
    """Sample-averaged bilinear weight matrix (pooled, size) for one axis.

    Matches torchvision roi_align with spatial_scale=1, sampling_ratio=-1,
    aligned=False (the defaults used by crop_roi)."""
    bin_size = roi_len / pooled
    grid_n = max(int(math.ceil(roi_len / pooled)), 1)
    p = np.arange(pooled, dtype=np.float64).reshape(pooled, 1)
    i = np.arange(grid_n, dtype=np.float64).reshape(1, grid_n)
    coords = start + p * bin_size + (i + 0.5) * bin_size / grid_n  # (P, grid_n)
    h = np.arange(size, dtype=np.float64).reshape(1, 1, size)
    c = coords[:, :, None]
    valid = (c >= -1.0) & (c <= float(size))
    cc = np.clip(c, 0.0, float(size - 1))
    w = np.maximum(0.0, 1.0 - np.abs(cc - h)) * valid
    return (w.sum(axis=1) / grid_n).astype(np.float32)  # (pooled, size)


def _pick_channel_tile(C, P, W, H, itemsize, budget_bytes=8 * 2**20):
    """Largest channel tile whose feature slab fits the budget (v7x VMEM)."""
    if H * C * W * itemsize <= budget_bytes:
        return C
    for cb in range(C, 0, -1):
        if C % cb:
            continue
        if ((cb * P) % 128 == 0 and (cb * W) % 128 == 0
                and H * cb * W * itemsize <= budget_bytes):
            return cb
    return C


class ImagePlaneProjectionPallas:
    """JAX/Pallas equivalent of ImagePlaneProjection (no learnable params)."""

    def __init__(self, triplane_dims=32, roi_block=8,
                 compute_dtype=jnp.float32, channel_tile=None):
        self.triplane_dims = triplane_dims
        self.roi_block = roi_block
        # bfloat16 halves feature DMA / VMEM and doubles MXU rate on v6e/v7x
        # (accumulation stays float32); float32 keeps reference fidelity.
        self.compute_dtype = compute_dtype
        self.channel_tile = channel_tile

    def __call__(self, encoder_features, depths, intrinsics, masks,
                 enable_projection=None, extrude_depth=None):
        if extrude_depth is not None:
            raise NotImplementedError
        P = self.triplane_dims
        RB = self.roi_block if (self.roi_block * P) % 8 == 0 else 8
        N, C, H, W = encoder_features.shape

        # ---- phase 1: host-side bbox / interpolation-matrix prep (all images
        #      first, so device launches are not interleaved with host math).
        per_image = []   # None -> `{}`, else (ays, axs, valid_indices)
        for batch_id in range(len(masks)):
            segments = masks[batch_id]
            if len(segments) == 0:
                per_image.append(None)
                continue
            ays, axs, valid = [], [], []
            for idx, mask in enumerate(segments):
                if enable_projection is not None and (
                        not enable_projection[batch_id][idx]):
                    continue
                seg = np.asarray(mask)[::4, ::4]
                if float(seg.sum()) < 10:
                    continue
                x1, y1, x2, y2 = _squared_box_from_mask(seg)
                roi_w = max(x2 - x1, 1.0)
                roi_h = max(y2 - y1, 1.0)
                ays.append(_interp_matrix(y1, roi_h, P, H))
                axs.append(_interp_matrix(x1, roi_w, P, W))
                valid.append(idx)
            per_image.append((ays, axs, valid))

        # ---- phase 2: pack every ROI of the batch into one padded launch ----
        blocks_img, ay_rows, ax_rows, offsets, counts = [], [], [], [], []
        for batch_id, entry in enumerate(per_image):
            if entry is None:
                offsets.append(0)
                counts.append(0)
                continue
            ays, axs, valid = entry
            k = len(valid)
            counts.append(k)
            if k == 0:
                offsets.append(0)
                continue
            kpad = RB * ((k + RB - 1) // RB)     # blocks never straddle images
            offsets.append(len(ay_rows))
            ay_rows.extend(ays)
            ax_rows.extend(axs)
            ay_rows.extend([np.zeros((P, H), np.float32)] * (kpad - k))
            ax_rows.extend([np.zeros((P, W), np.float32)] * (kpad - k))
            blocks_img.extend([batch_id] * (kpad // RB))

        total_valid = sum(counts)
        triplanes_all = None
        if total_valid > 0:
            nblocks = len(blocks_img)
            nblocks_pad = 1 << (nblocks - 1).bit_length()   # pow-2 bucket: no
            pad_blocks = nblocks_pad - nblocks              # per-R recompiles
            blocks_img.extend([0] * pad_blocks)
            ay_rows.extend([np.zeros((P, H), np.float32)] * (pad_blocks * RB))
            ax_rows.extend([np.zeros((P, W), np.float32)] * (pad_blocks * RB))
            rpad = nblocks_pad * RB

            cdt = self.compute_dtype
            ayf = jnp.asarray(np.stack(ay_rows).reshape(rpad * P, H), cdt)
            axd = jnp.asarray(np.stack(ax_rows), cdt)
            img_ids = jnp.asarray(np.asarray(blocks_img, np.int32))
            # f2[n, h, c*W + w] = feature[n, c, h, w]  (cheap XLA transpose)
            feats2 = jnp.transpose(encoder_features.astype(cdt),
                                   (0, 2, 1, 3)).reshape(N, H, C * W)

            cb = self.channel_tile or _pick_channel_tile(
                C, P, W, H, jnp.dtype(cdt).itemsize)
            if C % cb or (cb < C and ((cb * P) % 128 or (cb * W) % 128)):
                cb = C   # fall back to a single (always legal) channel tile

            o = _roi_align_batched(img_ids, ayf, axd, feats2,
                                   pooled=P, roi_block=RB, channel_tile=cb)
            # (Rpad, P, C*P) with o[r, q, c*P+p] -> (Rpad, C, P, P) [r, c, p, q]
            triplanes_all = o.reshape(rpad, P, C, P).transpose(0, 2, 3, 1)

        # ---- phase 3: scatter back into the per-image output structure ----
        batched_triplanes = []
        for batch_id, entry in enumerate(per_image):
            if entry is None:
                batched_triplanes.append({})
                continue
            _, _, valid = entry
            k = counts[batch_id]
            if k > 0:
                off = offsets[batch_id]
                feats = triplanes_all[off:off + k]
                # TODO(synk): torch returns int64 (LongTensor) indices; int32
                # is used here because JAX x64 is disabled by default.
                indices = jnp.asarray(np.asarray(valid, np.int32))
            else:
                feats = jnp.zeros((0,), jnp.float32)   # matches torch.zeros(0)
                indices = []                           # matches the reference
            batched_triplanes.append({
                'features': feats,
                'features_2d': feats,
                'indices': indices,
            })
        return batched_triplanes


# --------------------------------- demo ------------------------------------ #

if __name__ == "__main__":
    key = jax.random.PRNGKey(0)
    N, C, H, W = 2, 4, 16, 16          # encoder features (NCHW)
    full_h, full_w = 4 * H, 4 * W      # masks at 4x feature resolution
    triplane_dims = 8

    kf, _ = jax.random.split(key)
    encoder_features = jax.random.normal(kf, (N, C, H, W), jnp.float32)
    depths = jnp.zeros((N, full_h, full_w), jnp.float32)                 # unused
    intrinsics = jnp.tile(jnp.eye(3, dtype=jnp.float32)[None], (N, 1, 1))  # unused

    def rect_mask(r0, r1, c0, c1):
        m = np.zeros((full_h, full_w), dtype=np.float32)
        m[r0:r1, c0:c1] = 1.0
        return m

    masks = [
        [rect_mask(8, 40, 12, 52), rect_mask(20, 60, 4, 28)],
        [rect_mask(4, 24, 32, 62), rect_mask(0, 2, 0, 2)],  # 2nd: sum < 10 -> skipped
    ]

    module = ImagePlaneProjectionPallas(triplane_dims=triplane_dims)
    out = module(encoder_features, depths, intrinsics, masks)

    for entry in out:
        if 'features' in entry and entry['features'].size > 0:
            jax.block_until_ready(entry['features'])

    assert out[0]['features'].shape == (2, C, triplane_dims, triplane_dims)
    assert out[1]['features'].shape == (1, C, triplane_dims, triplane_dims)
    assert list(np.asarray(out[0]['indices'])) == [0, 1]
    assert list(np.asarray(out[1]['indices'])) == [0]

    # Numerical check against a pure-NumPy separable roi_align reference.
    feats_np = np.asarray(encoder_features, np.float64)
    for b, entry in enumerate(out):
        if 'features' not in entry or entry['features'].size == 0:
            continue
        got = np.asarray(entry['features'], np.float64)
        for j, idx in enumerate(np.asarray(entry['indices'])):
            seg = np.asarray(masks[b][int(idx)])[::4, ::4]
            x1, y1, x2, y2 = _squared_box_from_mask(seg)
            ay = _interp_matrix(y1, max(y2 - y1, 1.0), triplane_dims, H)
            ax = _interp_matrix(x1, max(x2 - x1, 1.0), triplane_dims, W)
            ref = np.einsum('ph,chw,qw->cpq', ay, feats_np[b], ax)
            np.testing.assert_allclose(got[j], ref, rtol=3e-2, atol=3e-2)

    print("KERNEL_OK")
</pallas_src>

<mosaic_0001>
module attributes {stable_mosaic.version = 11 : i64} {
  func.func @_roi_block_kernel(%arg0: i32, %arg1: i32, %arg2: memref<2xi32, #tpu.memory_space<smem>>, %arg3: memref<64x16xf32, #tpu.memory_space<vmem>>, %arg4: memref<8x8x16xf32, #tpu.memory_space<vmem>>, %arg5: memref<1x16x64xf32, #tpu.memory_space<vmem>>, %arg6: memref<8x8x32xf32, #tpu.memory_space<vmem>>) attributes {dimension_semantics = [#tpu.dimension_semantics<parallel>, #tpu.dimension_semantics<arbitrary>], iteration_bounds = array<i64: 2, 1>, scalar_prefetch = 1 : i64, scratch_operands = 0 : i64, tpu.core_type = #tpu.core_type<tc>, window_params = [{transform_indices = @transform_0, window_bounds = array<i64: 64, 16>}, {transform_indices = @transform_1, window_bounds = array<i64: 8, 8, 16>}, {transform_indices = @transform_2, window_bounds = array<i64: 1, 16, 64>}, {transform_indices = @transform_3, window_bounds = array<i64: 8, 8, 32>}]} {
    %c0 = arith.constant 0 : index
    %c0_0 = arith.constant 0 : index
    %0 = vector.load %arg3[%c0, %c0_0] : memref<64x16xf32, #tpu.memory_space<vmem>>, vector<64x16xf32>
    %c0_1 = arith.constant 0 : index
    %c0_2 = arith.constant 0 : index
    %c0_3 = arith.constant 0 : index
    %1 = vector.load %arg5[%c0_1, %c0_2, %c0_3] : memref<1x16x64xf32, #tpu.memory_space<vmem>>, vector<1x16x64xf32>
    %2 = vector.shape_cast %1 : vector<1x16x64xf32> to vector<16x64xf32>
    %cst = arith.constant dense<0.000000e+00> : vector<64x64xf32>
    %3 = tpu.matmul %0, %2, %cst {dimension_numbers = #tpu.dot_dimension_numbers<[1], [0], [0], [1], [0, 0, 1, 1], [], []>} : vector<64x16xf32>, vector<16x64xf32>, vector<64x64xf32> -> vector<64x64xf32>
    %4 = vector.extract_strided_slice %3 {offsets = [0, 0], sizes = [64, 16], strides = [1, 1]} : vector<64x64xf32> to vector<64x16xf32>
    %5 = vector.extract_strided_slice %3 {offsets = [0, 16], sizes = [64, 16], strides = [1, 1]} : vector<64x64xf32> to vector<64x16xf32>
    %6 = vector.extract_strided_slice %3 {offsets = [0, 32], sizes = [64, 16], strides = [1, 1]} : vector<64x64xf32> to vector<64x16xf32>
    %7 = vector.extract_strided_slice %3 {offsets = [0, 48], sizes = [64, 16], strides = [1, 1]} : vector<64x64xf32> to vector<64x16xf32>
    %8 = vector.shape_cast %4 : vector<64x16xf32> to vector<1x64x16xf32>
    %9 = vector.shape_cast %5 : vector<64x16xf32> to vector<1x64x16xf32>
    %10 = vector.shape_cast %6 : vector<64x16xf32> to vector<1x64x16xf32>
    %11 = vector.shape_cast %7 : vector<64x16xf32> to vector<1x64x16xf32>
    %12 = tpu.concatenate %8, %9, %10, %11 in 0 : vector<1x64x16xf32>, vector<1x64x16xf32>, vector<1x64x16xf32>, vector<1x64x16xf32> -> vector<4x64x16xf32>
    %13 = vector.extract_strided_slice %12 {offsets = [0, 0, 0], sizes = [4, 8, 16], strides = [1, 1, 1]} : vector<4x64x16xf32> to vector<4x8x16xf32>
    %14 = vector.shape_cast %13 : vector<4x8x16xf32> to vector<32x16xf32>
    %c0_4 = arith.constant 0 : index
    %c0_5 = arith.constant 0 : index
    %c0_6 = arith.constant 0 : index
    %15 = vector.load %arg4[%c0_4, %c0_5, %c0_6] : memref<8x8x16xf32, #tpu.memory_space<vmem>>, vector<1x8x16xf32>
    %16 = vector.shape_cast %15 : vector<1x8x16xf32> to vector<8x16xf32>
    %cst_7 = arith.constant dense<0.000000e+00> : vector<8x32xf32>
    %17 = tpu.matmul %16, %14, %cst_7 {dimension_numbers = #tpu.dot_dimension_numbers<[1], [1], [0], [0], [0, 0, 1, 0], [], []>} : vector<8x16xf32>, vector<32x16xf32>, vector<8x32xf32> -> vector<8x32xf32>
    %c0_8 = arith.constant 0 : index
    %c0_9 = arith.constant 0 : index
    %c0_10 = arith.constant 0 : index
    %18 = vector.load %arg6[%c0_8, %c0_9, %c0_10] : memref<8x8x32xf32, #tpu.memory_space<vmem>>, vector<1x8x32xf32>
    %19 = vector.shape_cast %18 : vector<1x8x32xf32> to vector<8x32xf32>
    %20 = vector.shape_cast %17 : vector<8x32xf32> to vector<1x8x32xf32>
    tpu.vector_store %arg6[%c0_8, %c0_9, %c0_10], %20 {strides = array<i32>} : memref<8x8x32xf32, #tpu.memory_space<vmem>>, vector<1x8x32xf32>,
    %21 = vector.extract_strided_slice %12 {offsets = [0, 8, 0], sizes = [4, 8, 16], strides = [1, 1, 1]} : vector<4x64x16xf32> to vector<4x8x16xf32>
    %22 = vector.shape_cast %21 : vector<4x8x16xf32> to vector<32x16xf32>
    %c1 = arith.constant 1 : index
    %c0_11 = arith.constant 0 : index
    %c0_12 = arith.constant 0 : index
    %23 = vector.load %arg4[%c1, %c0_11, %c0_12] : memref<8x8x16xf32, #tpu.memory_space<vmem>>, vector<1x8x16xf32>
    %24 = vector.shape_cast %23 : vector<1x8x16xf32> to vector<8x16xf32>
    %cst_13 = arith.constant dense<0.000000e+00> : vector<8x32xf32>
    %25 = tpu.matmul %24, %22, %cst_13 {dimension_numbers = #tpu.dot_dimension_numbers<[1], [1], [0], [0], [0, 0, 1, 0], [], []>} : vector<8x16xf32>, vector<32x16xf32>, vector<8x32xf32> -> vector<8x32xf32>
    %c1_14 = arith.constant 1 : index
    %c0_15 = arith.constant 0 : index
    %c0_16 = arith.constant 0 : index
    %26 = vector.load %arg6[%c1_14, %c0_15, %c0_16] : memref<8x8x32xf32, #tpu.memory_space<vmem>>, vector<1x8x32xf32>
    %27 = vector.shape_cast %26 : vector<1x8x32xf32> to vector<8x32xf32>
    %28 = vector.shape_cast %25 : vector<8x32xf32> to vector<1x8x32xf32>
    tpu.vector_store %arg6[%c1_14, %c0_15, %c0_16], %28 {strides = array<i32>} : memref<8x8x32xf32, #tpu.memory_space<vmem>>, vector<1x8x32xf32>,
    %29 = vector.extract_strided_slice %12 {offsets = [0, 16, 0], sizes = [4, 8, 16], strides = [1, 1, 1]} : vector<4x64x16xf32> to vector<4x8x16xf32>
    %30 = vector.shape_cast %29 : vector<4x8x16xf32> to vector<32x16xf32>
    %c2 = arith.constant 2 : index
    %c0_17 = arith.constant 0 : index
    %c0_18 = arith.constant 0 : index
    %31 = vector.load %arg4[%c2, %c0_17, %c0_18] : memref<8x8x16xf32, #tpu.memory_space<vmem>>, vector<1x8x16xf32>
    %32 = vector.shape_cast %31 : vector<1x8x16xf32> to vector<8x16xf32>
    %cst_19 = arith.constant dense<0.000000e+00> : vector<8x32xf32>
    %33 = tpu.matmul %32, %30, %cst_19 {dimension_numbers = #tpu.dot_dimension_numbers<[1], [1], [0], [0], [0, 0, 1, 0], [], []>} : vector<8x16xf32>, vector<32x16xf32>, vector<8x32xf32> -> vector<8x32xf32>
    %c2_20 = arith.constant 2 : index
    %c0_21 = arith.constant 0 : index
    %c0_22 = arith.constant 0 : index
    %34 = vector.load %arg6[%c2_20, %c0_21, %c0_22] : memref<8x8x32xf32, #tpu.memory_space<vmem>>, vector<1x8x32xf32>
    %35 = vector.shape_cast %34 : vector<1x8x32xf32> to vector<8x32xf32>
    %36 = vector.shape_cast %33 : vector<8x32xf32> to vector<1x8x32xf32>
    tpu.vector_store %arg6[%c2_20, %c0_21, %c0_22], %36 {strides = array<i32>} : memref<8x8x32xf32, #tpu.memory_space<vmem>>, vector<1x8x32xf32>,
    %37 = vector.extract_strided_slice %12 {offsets = [0, 24, 0], sizes = [4, 8, 16], strides = [1, 1, 1]} : vector<4x64x16xf32> to vector<4x8x16xf32>
    %38 = vector.shape_cast %37 : vector<4x8x16xf32> to vector<32x16xf32>
    %c3 = arith.constant 3 : index
    %c0_23 = arith.constant 0 : index
    %c0_24 = arith.constant 0 : index
    %39 = vector.load %arg4[%c3, %c0_23, %c0_24] : memref<8x8x16xf32, #tpu.memory_space<vmem>>, vector<1x8x16xf32>
    %40 = vector.shape_cast %39 : vector<1x8x16xf32> to vector<8x16xf32>
    %cst_25 = arith.constant dense<0.000000e+00> : vector<8x32xf32>
    %41 = tpu.matmul %40, %38, %cst_25 {dimension_numbers = #tpu.dot_dimension_numbers<[1], [1], [0], [0], [0, 0, 1, 0], [], []>} : vector<8x16xf32>, vector<32x16xf32>, vector<8x32xf32> -> vector<8x32xf32>
    %c3_26 = arith.constant 3 : index
    %c0_27 = arith.constant 0 : index
    %c0_28 = arith.constant 0 : index
    %42 = vector.load %arg6[%c3_26, %c0_27, %c0_28] : memref<8x8x32xf32, #tpu.memory_space<vmem>>, vector<1x8x32xf32>
    %43 = vector.shape_cast %42 : vector<1x8x32xf32> to vector<8x32xf32>
    %44 = vector.shape_cast %41 : vector<8x32xf32> to vector<1x8x32xf32>
    tpu.vector_store %arg6[%c3_26, %c0_27, %c0_28], %44 {strides = array<i32>} : memref<8x8x32xf32, #tpu.memory_space<vmem>>, vector<1x8x32xf32>,
    %45 = vector.extract_strided_slice %12 {offsets = [0, 32, 0], sizes = [4, 8, 16], strides = [1, 1, 1]} : vector<4x64x16xf32> to vector<4x8x16xf32>
    %46 = vector.shape_cast %45 : vector<4x8x16xf32> to vector<32x16xf32>
    %c4 = arith.constant 4 : index
    %c0_29 = arith.constant 0 : index
    %c0_30 = arith.constant 0 : index
    %47 = vector.load %arg4[%c4, %c0_29, %c0_30] : memref<8x8x16xf32, #tpu.memory_space<vmem>>, vector<1x8x16xf32>
    %48 = vector.shape_cast %47 : vector<1x8x16xf32> to vector<8x16xf32>
    %cst_31 = arith.constant dense<0.000000e+00> : vector<8x32xf32>
    %49 = tpu.matmul %48, %46, %cst_31 {dimension_numbers = #tpu.dot_dimension_numbers<[1], [1], [0], [0], [0, 0, 1, 0], [], []>} : vector<8x16xf32>, vector<32x16xf32>, vector<8x32xf32> -> vector<8x32xf32>
    %c4_32 = arith.constant 4 : index
    %c0_33 = arith.constant 0 : index
    %c0_34 = arith.constant 0 : index
    %50 = vector.load %arg6[%c4_32, %c0_33, %c0_34] : memref<8x8x32xf32, #tpu.memory_space<vmem>>, vector<1x8x32xf32>
    %51 = vector.shape_cast %50 : vector<1x8x32xf32> to vector<8x32xf32>
    %52 = vector.shape_cast %49 : vector<8x32xf32> to vector<1x8x32xf32>
    tpu.vector_store %arg6[%c4_32, %c0_33, %c0_34], %52 {strides = array<i32>} : memref<8x8x32xf32, #tpu.memory_space<vmem>>, vector<1x8x32xf32>,
    %53 = vector.extract_strided_slice %12 {offsets = [0, 40, 0], sizes = [4, 8, 16], strides = [1, 1, 1]} : vector<4x64x16xf32> to vector<4x8x16xf32>
    %54 = vector.shape_cast %53 : vector<4x8x16xf32> to vector<32x16xf32>
    %c5 = arith.constant 5 : index
    %c0_35 = arith.constant 0 : index
    %c0_36 = arith.constant 0 : index
    %55 = vector.load %arg4[%c5, %c0_35, %c0_36] : memref<8x8x16xf32, #tpu.memory_space<vmem>>, vector<1x8x16xf32>
    %56 = vector.shape_cast %55 : vector<1x8x16xf32> to vector<8x16xf32>
    %cst_37 = arith.constant dense<0.000000e+00> : vector<8x32xf32>
    %57 = tpu.matmul %56, %54, %cst_37 {dimension_numbers = #tpu.dot_dimension_numbers<[1], [1], [0], [0], [0, 0, 1, 0], [], []>} : vector<8x16xf32>, vector<32x16xf32>, vector<8x32xf32> -> vector<8x32xf32>
    %c5_38 = arith.constant 5 : index
    %c0_39 = arith.constant 0 : index
    %c0_40 = arith.constant 0 : index
    %58 = vector.load %arg6[%c5_38, %c0_39, %c0_40] : memref<8x8x32xf32, #tpu.memory_space<vmem>>, vector<1x8x32xf32>
    %59 = vector.shape_cast %58 : vector<1x8x32xf32> to vector<8x32xf32>
    %60 = vector.shape_cast %57 : vector<8x32xf32> to vector<1x8x32xf32>
    tpu.vector_store %arg6[%c5_38, %c0_39, %c0_40], %60 {strides = array<i32>} : memref<8x8x32xf32, #tpu.memory_space<vmem>>, vector<1x8x32xf32>,
    %61 = vector.extract_strided_slice %12 {offsets = [0, 48, 0], sizes = [4, 8, 16], strides = [1, 1, 1]} : vector<4x64x16xf32> to vector<4x8x16xf32>
    %62 = vector.shape_cast %61 : vector<4x8x16xf32> to vector<32x16xf32>
    %c6 = arith.constant 6 : index
    %c0_41 = arith.constant 0 : index
    %c0_42 = arith.constant 0 : index
    %63 = vector.load %arg4[%c6, %c0_41, %c0_42] : memref<8x8x16xf32, #tpu.memory_space<vmem>>, vector<1x8x16xf32>
    %64 = vector.shape_cast %63 : vector<1x8x16xf32> to vector<8x16xf32>
    %cst_43 = arith.constant dense<0.000000e+00> : vector<8x32xf32>
    %65 = tpu.matmul %64, %62, %cst_43 {dimension_numbers = #tpu.dot_dimension_numbers<[1], [1], [0], [0], [0, 0, 1, 0], [], []>} : vector<8x16xf32>, vector<32x16xf32>, vector<8x32xf32> -> vector<8x32xf32>
    %c6_44 = arith.constant 6 : index
    %c0_45 = arith.constant 0 : index
    %c0_46 = arith.constant 0 : index
    %66 = vector.load %arg6[%c6_44, %c0_45, %c0_46] : memref<8x8x32xf32, #tpu.memory_space<vmem>>, vector<1x8x32xf32>
    %67 = vector.shape_cast %66 : vector<1x8x32xf32> to vector<8x32xf32>
    %68 = vector.shape_cast %65 : vector<8x32xf32> to vector<1x8x32xf32>
    tpu.vector_store %arg6[%c6_44, %c0_45, %c0_46], %68 {strides = array<i32>} : memref<8x8x32xf32, #tpu.memory_space<vmem>>, vector<1x8x32xf32>,
    %69 = vector.extract_strided_slice %12 {offsets = [0, 56, 0], sizes = [4, 8, 16], strides = [1, 1, 1]} : vector<4x64x16xf32> to vector<4x8x16xf32>
    %70 = vector.shape_cast %69 : vector<4x8x16xf32> to vector<32x16xf32>
    %c7 = arith.constant 7 : index
    %c0_47 = arith.constant 0 : index
    %c0_48 = arith.constant 0 : index
    %71 = vector.load %arg4[%c7, %c0_47, %c0_48] : memref<8x8x16xf32, #tpu.memory_space<vmem>>, vector<1x8x16xf32>
    %72 = vector.shape_cast %71 : vector<1x8x16xf32> to vector<8x16xf32>
    %cst_49 = arith.constant dense<0.000000e+00> : vector<8x32xf32>
    %73 = tpu.matmul %72, %70, %cst_49 {dimension_numbers = #tpu.dot_dimension_numbers<[1], [1], [0], [0], [0, 0, 1, 0], [], []>} : vector<8x16xf32>, vector<32x16xf32>, vector<8x32xf32> -> vector<8x32xf32>
    %c7_50 = arith.constant 7 : index
    %c0_51 = arith.constant 0 : index
    %c0_52 = arith.constant 0 : index
    %74 = vector.load %arg6[%c7_50, %c0_51, %c0_52] : memref<8x8x32xf32, #tpu.memory_space<vmem>>, vector<1x8x32xf32>
    %75 = vector.shape_cast %74 : vector<1x8x32xf32> to vector<8x32xf32>
    %76 = vector.shape_cast %73 : vector<8x32xf32> to vector<1x8x32xf32>
    tpu.vector_store %arg6[%c7_50, %c0_51, %c0_52], %76 {strides = array<i32>} : memref<8x8x32xf32, #tpu.memory_space<vmem>>, vector<1x8x32xf32>,
    return
  }
  func.func @transform_0(%arg0: i32, %arg1: i32, %arg2: memref<2xi32, #tpu.memory_space<smem>>) -> (i32, i32) {
    %c0_i32 = arith.constant 0 : i32
    %c0_i32_0 = arith.constant 0 : i32
    return %arg0, %c0_i32 : i32, i32
  }
  func.func @transform_1(%arg0: i32, %arg1: i32, %arg2: memref<2xi32, #tpu.memory_space<smem>>) -> (i32, i32, i32) {
    %c0_i32 = arith.constant 0 : i32
    %c0_i32_0 = arith.constant 0 : i32
    %c0_i32_1 = arith.constant 0 : i32
    return %arg0, %c0_i32, %c0_i32_0 : i32, i32, i32
  }
  func.func @transform_2(%arg0: i32, %arg1: i32, %arg2: memref<2xi32, #tpu.memory_space<smem>>) -> (i32, i32, i32) {
    %0 = arith.index_cast %arg0 : i32 to index
    %1 = memref.load %arg2[%0] : memref<2xi32, #tpu.memory_space<smem>>
    %c0_i32 = arith.constant 0 : i32
    %c0_i32_0 = arith.constant 0 : i32
    return %1, %c0_i32, %arg1 : i32, i32, i32
  }
  func.func @transform_3(%arg0: i32, %arg1: i32, %arg2: memref<2xi32, #tpu.memory_space<smem>>) -> (i32, i32, i32) {
    %c0_i32 = arith.constant 0 : i32
    %c0_i32_0 = arith.constant 0 : i32
    return %arg0, %c0_i32, %arg1 : i32, i32, i32
  }
}

</mosaic_0001>

<llo_original>
// kernel: tpu_custom_call.1
$region0: #{tpu_custom_call.1}
  #allocation0 [shape = 'u32[]', space=smem, size = 0x4, offset = 0x4, fixed_abs, tag = 'smem constant byte address 0x4 - core index']
  #allocation1 [shape = 'u32[144,128]{1,0:T(1,128)}', space=vmem, size = 0x12000, scoped, tag = 'internal scratch']
  #allocation2 [shape = 's32[1]{0}', space=sflag, size = 0x4, scoped, tag = 'scoped memory for tpu_custom_call.1']
  #allocation3 [shape = 'u8[512]{0}', space=smem, size = 0x200, scoped, tag = 'prefetched SMEM operand 0']
  %s0 = inlined_call_operand.vmem [shape: s32[2], index: 0, kind: input, shape index: {}]
  %s1 = inlined_call_operand.vmem [shape: f32[128,16], index: 1, kind: input, shape index: {}]
  %s2 = inlined_call_operand.vmem [shape: f32[16,8,16], index: 2, kind: input, shape index: {}]
  %s3 = inlined_call_operand.hbm [shape: f32[2,16,64], index: 3, kind: input, shape index: {}]
  %s4 = inlined_call_operand.hbm [shape: f32[16,8,32], index: 4, kind: output, shape index: {}]
  %s5 = sld [smem:[#allocation0]]
  $region49: #{tpu_custom_call.1} parent=0
    _
  %s7 = ssub.s32 1, %s5
  %s8 = scalar_select 0, %s7, %s5
  %s9 = sshll.u32 %s0, 4
  %s10 = int_to_ptr.vmem [resolvable:$true] %s9
  %12 = dma.vmem_to_smem %s10, 16, [#allocation3], [#allocation2]
  %13 = dma.done [#allocation2], 16
  %14 = sfence
  $region1: #{tpu_custom_call.1} parent=0
    #allocation4 [shape = 'u8[16384]{0}', space=vmem, size = 0x4000, scoped, tag = 'input window, operand 3']
    #allocation5 [shape = 's32[2]{0}', space=sflag, size = 0x8, scoped, tag = 'scoped memory for tpu_custom_call.1']
    #allocation6 [shape = 's32[2]{0}', space=sflag, size = 0x8, scoped, tag = 'scoped memory for tpu_custom_call.1']
    #allocation7 [shape = 'u8[65536]{0}', space=vmem, size = 0x10000, scoped, tag = 'output window, operand 0']
    %15 = vsyncpa [#allocation5], 0
    %s16 = scalar_lea.sflag [#allocation5], 1
    %17 = vsyncpa %s16, 0
    %18 = vsyncpa [#allocation6], 0
    %s19 = scalar_lea.sflag [#allocation6], 1
    %20 = vsyncpa %s19, 0
    loop: start=0, step=1, limit=4
    $region2: #{tpu_custom_call.1} parent=1 // loop_pre_header
      _
    $region3: #{tpu_custom_call.1} parent=1 // loop_header
      %s22 = sphi 0, %s26
      %p23 = scmp.ge.s32.totalorder %s22, 4
      %s29 = sphi 0, %s41
      %s30 = sphi 0, %s37
      %s31 = sphi 0, %s29
      %s32 = sphi 0, %s30
      %s33 = sphi 0, %s31
      %s34 = sphi 0, %s32
      %s44 = sphi 0, %s46
      %s47 = sphi 0, %s44
      %s48 = sphi 0, %s47
      %s64 = sphi 0, %s48
      %s70 = sphi 0, %s72
      %s73 = sphi 0, %s70
      %s74 = sphi 0, %s73
      %s90 = sphi 0, %s74
      %s100 = sphi 0, %s102
      %s103 = sphi 0, %s100
      %s104 = sphi 0, %s103
      %s120 = sphi 0, %s104
      %s128 = sphi 0, %s130
      %s131 = sphi 0, %s128
      %s132 = sphi 0, %s131
      %s148 = sphi 0, %s132
    $region4: #{tpu_custom_call.1} parent=1 // loop_header_branch
      %25 = sbr.rel (%p23) target = $region8
    $region5: #{tpu_custom_call.1} parent=1 // loop_body
      %s27 = ssub.s32 %s22, 1
      %s28 = ssub.s32 %s22, 2
      %s35 = sadd.s32 1, %s30
      %p36 = scmp.ge.s32.totalorder %s35, 1
      %s37 = scalar_select %p36, 0, %s35
      %s38 = sadd.s32 1, %s29
      %s39 = scalar_select %p36, %s38, %s29
      %p40 = scmp.ge.s32.totalorder %s39, 2
      %s41 = scalar_select %p40, 0, %s39
      %s42 = ssub.s32 %s29, %s41
      %p43 = scmp.eq.s32.totalorder %s42, 0
      %s45 = sadd.s32 %s44, 1
      %s46 = scalar_select %p43, %s44, %s45
      %p49 = pneg %p43
      %p50 = scmp.eq.s32.totalorder %s22, 1
      %p51 = por %p49, %p50
      %p52 = scmp.ne.s32.totalorder %s44, %s47
      %p53 = scmp.eq.s32.totalorder %s22, 0
      %p54 = por %p52, %p53
      %p55 = scmp.ne.s32.totalorder %s44, %s47
      %p56 = scmp.eq.s32.totalorder %s27, 1
      %p57 = por %p55, %p56
      %p58 = scmp.ne.s32.totalorder %s47, %s48
      %p59 = scmp.eq.s32.totalorder %s27, 0
      %p60 = por %p58, %p59
      %p61 = scmp.ne.s32.totalorder %s47, %s48
      %p62 = scmp.eq.s32.totalorder %s28, 1
      %p63 = por %p61, %p62
      %p65 = scmp.ne.s32.totalorder %s48, %s64
      %p66 = scmp.eq.s32.totalorder %s28, 0
      %p67 = por %p65, %p66
      %s68 = ssub.s32 %s29, %s41
      %p69 = scmp.eq.s32.totalorder %s68, 0
      %s71 = sadd.s32 %s70, 1
      %s72 = scalar_select %p69, %s70, %s71
      %p75 = pneg %p69
      %p76 = scmp.eq.s32.totalorder %s22, 1
      %p77 = por %p75, %p76
      %p78 = scmp.ne.s32.totalorder %s70, %s73
      %p79 = scmp.eq.s32.totalorder %s22, 0
      %p80 = por %p78, %p79
      %p81 = scmp.ne.s32.totalorder %s70, %s73
      %p82 = scmp.eq.s32.totalorder %s27, 1
      %p83 = por %p81, %p82
      %p84 = scmp.ne.s32.totalorder %s73, %s74
      %p85 = scmp.eq.s32.totalorder %s27, 0
      %p86 = por %p84, %p85
      %p87 = scmp.ne.s32.totalorder %s73, %s74
      %p88 = scmp.eq.s32.totalorder %s28, 1
      %p89 = por %p87, %p88
      %p91 = scmp.ne.s32.totalorder %s74, %s90
      %p92 = scmp.eq.s32.totalorder %s28, 0
      %p93 = por %p91, %p92
      %s94 = sld [smem:[#allocation3 + %s29]]
      %s95 = sld [smem:[#allocation3 + %s41]]
      %s96 = ssub.s32 %s94, %s95
      %s97 = ssub.s32 %s30, %s37
      %s98 = sor.u32 %s96, %s97
      %p99 = scmp.eq.s32.totalorder %s98, 0
      %s101 = sadd.s32 %s100, 1
      %s102 = scalar_select %p99, %s100, %s101
      %p105 = pneg %p99
      %p106 = scmp.eq.s32.totalorder %s22, 1
      %p107 = por %p105, %p106
      %p108 = scmp.ne.s32.totalorder %s100, %s103
      %p109 = scmp.eq.s32.totalorder %s22, 0
      %p110 = por %p108, %p109
      %p111 = scmp.ne.s32.totalorder %s100, %s103
      %p112 = scmp.eq.s32.totalorder %s27, 1
      %p113 = por %p111, %p112
      %p114 = scmp.ne.s32.totalorder %s103, %s104
      %p115 = scmp.eq.s32.totalorder %s27, 0
      %p116 = por %p114, %p115
      %p117 = scmp.ne.s32.totalorder %s103, %s104
      %p118 = scmp.eq.s32.totalorder %s28, 1
      %p119 = por %p117, %p118
      %p121 = scmp.ne.s32.totalorder %s104, %s120
      %p122 = scmp.eq.s32.totalorder %s28, 0
      %p123 = por %p121, %p122
      %s124 = ssub.s32 %s29, %s41
      %s125 = ssub.s32 %s30, %s37
      %s126 = sor.u32 %s124, %s125
      %p127 = scmp.eq.s32.totalorder %s126, 0
      %s129 = sadd.s32 %s128, 1
      %s130 = scalar_select %p127, %s128, %s129
      %p133 = pneg %p127
      %p134 = scmp.eq.s32.totalorder %s22, 1
      %p135 = por %p133, %p134
      %p136 = scmp.ne.s32.totalorder %s128, %s131
      %p137 = scmp.eq.s32.totalorder %s22, 0
      %p138 = por %p136, %p137
      %p139 = scmp.ne.s32.totalorder %s128, %s131
      %p140 = scmp.eq.s32.totalorder %s27, 1
      %p141 = por %p139, %p140
      %p142 = scmp.ne.s32.totalorder %s131, %s132
      %p143 = scmp.eq.s32.totalorder %s27, 0
      %p144 = por %p142, %p143
      %p145 = scmp.ne.s32.totalorder %s131, %s132
      %p146 = scmp.eq.s32.totalorder %s28, 1
      %p147 = por %p145, %p146
      %p149 = scmp.ne.s32.totalorder %s132, %s148
      %p150 = scmp.eq.s32.totalorder %s28, 0
      %p151 = por %p149, %p150
      %p152 = scmp.le.s32.totalorder 1, %s22
      %p153 = scmp.lt.s32.totalorder %s22, 3
      %p154 = pnand %p152, %p153
      %p155 = pneg %p154
      // Predicated region
      $region9: #{tpu_custom_call.1} parent=5 // pred_check
        _
      $region10: #{tpu_custom_call.1} parent=5 // pred_check_branch
        %157 = sbr.rel (%p154) target = $region12
      $region11: #{tpu_custom_call.1} parent=5 // pred_region
        %s158 = ssub.s32 %s22, 1
      $region12: #{tpu_custom_call.1} parent=5 // pred_fallthru
        _
      %p159 = scmp.lt.s32.totalorder %s22, 2
      // Predicated region
      $region13: #{tpu_custom_call.1} parent=5 // pred_check
        %p160 = pneg %p159
      $region14: #{tpu_custom_call.1} parent=5 // pred_check_branch
        %162 = sbr.rel (%p160) target = $region16
      $region15: #{tpu_custom_call.1} parent=5 // pred_region
        // Predicated region
        $region17: #{tpu_custom_call.1} parent=15 // pred_check
          %p163 = pneg %p54
        $region18: #{tpu_custom_call.1} parent=15 // pred_check_branch
          %165 = sbr.rel (%p163) target = $region20
        $region19: #{tpu_custom_call.1} parent=15 // pred_region
          %s166 = smul.u32 8, %s29
          %p167 = scmp.lt.s32.totalorder %s166, 15
          %s168 = scalar_select %p167, %s166, 15
          %s169 = smul.addr %s168, 8
          %s170 = scalar_lea.vmem %s1, %s169
          %s171 = smul.u32 8, %s29
        $region20: #{tpu_custom_call.1} parent=15 // pred_fallthru
          _
        // Predicated region
        $region21: #{tpu_custom_call.1} parent=15 // pred_check
          %p172 = pneg %p80
        $region22: #{tpu_custom_call.1} parent=15 // pred_check_branch
          %174 = sbr.rel (%p172) target = $region24
        $region23: #{tpu_custom_call.1} parent=15 // pred_region
          %s175 = smul.u32 8, %s29
          %p176 = scmp.lt.s32.totalorder %s175, 15
          %s177 = scalar_select %p176, %s175, 15
          %s178 = smul.addr %s177, 8
          %s179 = scalar_lea.vmem %s2, %s178
          %s180 = smul.u32 8, %s29
        $region24: #{tpu_custom_call.1} parent=15 // pred_fallthru
          _
        // Predicated region
        $region25: #{tpu_custom_call.1} parent=15 // pred_check
          %p181 = pneg %p110
        $region26: #{tpu_custom_call.1} parent=15 // pred_check_branch
          %183 = sbr.rel (%p181) target = $region28
        $region27: #{tpu_custom_call.1} parent=15 // pred_region
          %s184 = sand.u32 %s100, 1
          %s185 = scalar_lea.sflag [#allocation5], %s184
          %s186 = sand.u32 %s100, 1
          %s187 = smul.addr %s186, 16
          %s188 = scalar_lea.vmem [#allocation4], %s187
          %s189 = sld [smem:[#allocation3 + %s29]]
          %s191 = ssub.s32 256, 256
          %192 = vsyncadd %s185, %s191
          %s193 = smul.addr %s189, 2
          %s194 = sadd.s32 %s30, %s193
          %s195 = smul.addr %s194, 128
          %s196 = scalar_lea.hbm %s3, %s195
          %s197 = sshll.u32 %s188, 4
          %s198 = int_to_ptr.vmem [resolvable:$true] %s197
          %203 = dma.hbm_to_vmem [thread:$0]  %s196, 256, %s198, %s185, 128, 128, 8
        $region28: #{tpu_custom_call.1} parent=15 // pred_fallthru
          _
      $region16: #{tpu_custom_call.1} parent=5 // pred_fallthru
        _
      %p204 = scmp.le.s32.totalorder 1, %s22
      %p205 = scmp.lt.s32.totalorder %s22, 3
      %p206 = pnand %p204, %p205
      %p207 = pneg %p206
      // Predicated region
      $region29: #{tpu_custom_call.1} parent=5 // pred_check
        _
      $region30: #{tpu_custom_call.1} parent=5 // pred_check_branch
        %209 = sbr.rel (%p206) target = $region32
      $region31: #{tpu_custom_call.1} parent=5 // pred_region
        %s210 = ssub.s32 %s22, 1
        %s211 = sand.u32 %s103, 1
        %s212 = scalar_lea.sflag [#allocation5], %s211
        %s213 = sand.u32 %s103, 1
        %s214 = smul.addr %s213, 16
        %s215 = scalar_lea.vmem [#allocation4], %s214
        // Predicated region
        $region33: #{tpu_custom_call.1} parent=31 // pred_check
          %p216 = pneg %p116
        $region34: #{tpu_custom_call.1} parent=31 // pred_check_branch
          %218 = sbr.rel (%p216) target = $region36
        $region35: #{tpu_custom_call.1} parent=31 // pred_region
          %219 = dma.done %s212, 256
        $region36: #{tpu_custom_call.1} parent=31 // pred_fallthru
          _
        %s220 = smul.u32 8, %s31
        %p221 = scmp.lt.s32.totalorder %s220, 15
        %s222 = scalar_select %p221, %s220, 15
        %s223 = smul.addr %s222, 8
        %s224 = scalar_lea.vmem %s1, %s223
        %p225 = pneg %p60
        %p226 = pneg %p57
        %s227 = smul.u32 8, %s31
        %p228 = scmp.lt.s32.totalorder %s227, 15
        %s229 = scalar_select %p228, %s227, 15
        %s230 = smul.addr %s229, 8
        %s231 = scalar_lea.vmem %s2, %s230
        %p232 = pneg %p86
        %p233 = pneg %p83
        %s234 = sand.u32 %s103, 1
        %s235 = scalar_lea.sflag [#allocation5], %s234
        %s236 = sand.u32 %s103, 1
        %s237 = smul.addr %s236, 16
        %s238 = scalar_lea.vmem [#allocation4], %s237
        %p239 = pneg %p116
        %p240 = pneg %p113
        %p241 = pneg %p144
        %p242 = pneg %p141
        %s243 = sand.u32 %s131, 1
        %s244 = scalar_lea.sflag [#allocation6], %s243
        %s245 = sand.u32 %s131, 1
        %s246 = smul.addr %s245, 64
        %s247 = scalar_lea.vmem [#allocation7], %s246
        %s248 = smul.u32 8, %s31
        %p249 = scmp.lt.s32.totalorder %s248, 15
        %s250 = scalar_select %p249, %s248, 15
        %s251 = smul.addr %s250, 8
        %s252 = scalar_lea.vmem %s1, %s251
        %s253 = smul.u32 8, %s31
        %s254 = smul.u32 8, %s31
        %p255 = scmp.lt.s32.totalorder %s254, 15
        %s256 = scalar_select %p255, %s254, 15
        %s257 = smul.addr %s256, 8
        %s258 = scalar_lea.vmem %s2, %s257
        %s259 = smul.u32 8, %s31
        %s260 = sld [smem:[#allocation3 + %s31]]
        %s261 = smul.u32 8, %s31
        %v262 = vld [vmem:[%s252] sm:$0xff]
        %v263 = vld [vmem:[%s252 + $0x8] sm:$0xff]
        %v264 = vld [vmem:[%s252 + $0x10] sm:$0xff]
        %v265 = vld [vmem:[%s252 + $0x18] sm:$0xff]
        %v266 = vld [vmem:[%s252 + $0x20] sm:$0xff]
        %v267 = vld [vmem:[%s252 + $0x28] sm:$0xff]
        %v268 = vld [vmem:[%s252 + $0x30] sm:$0xff]
        %v269 = vld [vmem:[%s252 + $0x38] sm:$0xff]
        %v270 = vld [vmem:[%s215] sm:$0xff]
        %v271 = vld [vmem:[%s215 + $0x8] sm:$0xff]
        %vm272 = vcmask 130048
        %v274 = vsel %vm272, %v262, 0
        %v277 = vsel %vm272, %v263, 0
        %v280 = vsel %vm272, %v264, 0
        %v283 = vsel %vm272, %v265, 0
        %v286 = vsel %vm272, %v266, 0
        %v289 = vsel %vm272, %v267, 0
        %v292 = vsel %vm272, %v268, 0
        %v295 = vsel %vm272, %v269, 0
        %297 = vmatprep.subr.mxu0 0.0
        %298 = vmatpush1.msra.mxu0 %v270
        %299 = vmatprep.subr.mxu0 0.0
        %300 = vmatpush1.msra.mxu0 %v271
        %301 = vmatprep.subr.mxu0 0.0
        %302 = vmatpush1.msra.mxu0 0.0
        %303 = vmatprep.subr.mxu0 0.0
        %304 = vmatpush1.msra.mxu0 0.0
        %305 = vmatprep.subr.mxu0 0.0
        %306 = vmatpush1.msra.mxu0 0.0
        %307 = vmatprep.subr.mxu0 0.0
        %308 = vmatpush1.msra.mxu0 0.0
        %309 = vmatprep.subr.mxu0 0.0
        %310 = vmatpush1.msra.mxu0 0.0
        %311 = vmatprep.subr.mxu0 0.0
        %312 = vmatpush1.msra.mxu0 0.0
        %313 = vmatprep.subr.mxu0 0.0
        %314 = vmatpush1.msra.mxu0 0.0
        %315 = vmatprep.subr.mxu0 0.0
        %316 = vmatpush1.msra.mxu0 0.0
        %317 = vmatprep.subr.mxu0 0.0
        %318 = vmatpush1.msra.mxu0 0.0
        %319 = vmatprep.subr.mxu0 0.0
        %320 = vmatpush1.msra.mxu0 0.0
        %321 = vmatprep.subr.mxu0 0.0
        %322 = vmatpush1.msra.mxu0 0.0
        %323 = vmatprep.subr.mxu0 0.0
        %324 = vmatpush1.msra.mxu0 0.0
        %325 = vmatprep.subr.mxu0 0.0
        %326 = vmatpush1.msra.mxu0 0.0
        %327 = vmatprep.subr.mxu0 0.0
        %328 = vmatpush1.msra.mxu0 0.0
        %329 = vmatprep.subr.mxu0 0.0
        %330 = vmatpush1.msra.mxu0 0.0
        %331 = vmatprep.subr.mxu0 0.0
        %332 = vmatpush1.msra.mxu0 0.0
        %333 = vmatprep.subr.mxu0 0.0
        %334 = vmatpush1.msra.mxu0 0.0
        %335 = vmatprep.subr.mxu0 0.0
        %336 = vmatpush1.msra.mxu0 0.0
        %337 = vmatprep.subr.mxu0 0.0
        %338 = vmatpush1.msra.mxu0 0.0
        %339 = vmatprep.subr.mxu0 0.0
        %340 = vmatpush1.msra.mxu0 0.0
        %341 = vmatprep.subr.mxu0 0.0
        %342 = vmatpush1.msra.mxu0 0.0
        %343 = vmatprep.subr.mxu0 0.0
        %344 = vmatpush1.msra.mxu0 0.0
        %345 = vmatprep.subr.mxu0 0.0
        %346 = vmatpush1.msra.mxu0 0.0
        %347 = vmatprep.subr.mxu0 0.0
        %348 = vmatpush1.msra.mxu0 0.0
        %349 = vmatprep.subr.mxu0 0.0
        %350 = vmatpush1.msra.mxu0 0.0
        %351 = vmatprep.subr.mxu0 0.0
        %352 = vmatpush1.msra.mxu0 0.0
        %353 = vmatprep.subr.mxu0 0.0
        %354 = vmatpush1.msra.mxu0 0.0
        %355 = vmatprep.subr.mxu0 0.0
        %356 = vmatpush1.msra.mxu0 0.0
        %357 = vmatprep.subr.mxu0 0.0
        %358 = vmatpush1.msra.mxu0 0.0
        %359 = vmatprep.subr.mxu0 0.0
        %360 = vmatpush1.msra.mxu0 0.0
        %361 = vmatprep.mubr.f32.mxu0 0.0
        %362 = vmatmul.mubr.f32.gmra.mrb[0].mxu0 %v274
        %v363 = vpop.f32.mrb[0].mxu0
        %v364 = vadd.f32 0.0, %v363
        %v365 = vpop.f32.mrb[0].mxu0
        %366 = vmatprep.mubr.f32.mxu0 0.0
        %367 = vmatmul.mubr.f32.gmra.mrb[0].mxu0 %v277
        %v368 = vpop.f32.mrb[0].mxu0
        %v369 = vadd.f32 0.0, %v368
        %v370 = vpop.f32.mrb[0].mxu0
        %371 = vmatprep.mubr.f32.mxu0 0.0
        %372 = vmatmul.mubr.f32.gmra.mrb[0].mxu0 %v280
        %v373 = vpop.f32.mrb[0].mxu0
        %v374 = vadd.f32 0.0, %v373
        %v375 = vpop.f32.mrb[0].mxu0
        %376 = vmatprep.mubr.f32.mxu0 0.0
        %377 = vmatmul.mubr.f32.gmra.mrb[0].mxu0 %v283
        %v378 = vpop.f32.mrb[0].mxu0
        %v379 = vadd.f32 0.0, %v378
        %v380 = vpop.f32.mrb[0].mxu0
        %381 = vmatprep.mubr.f32.mxu0 0.0
        %382 = vmatmul.mubr.f32.gmra.mrb[0].mxu0 %v286
        %v383 = vpop.f32.mrb[0].mxu0
        %v384 = vadd.f32 0.0, %v383
        %v385 = vpop.f32.mrb[0].mxu0
        %386 = vmatprep.mubr.f32.mxu0 0.0
        %387 = vmatmul.mubr.f32.gmra.mrb[0].mxu0 %v289
        %v388 = vpop.f32.mrb[0].mxu0
        %v389 = vadd.f32 0.0, %v388
        %v390 = vpop.f32.mrb[0].mxu0
        %391 = vmatprep.mubr.f32.mxu0 0.0
        %392 = vmatmul.mubr.f32.gmra.mrb[0].mxu0 %v292
        %v393 = vpop.f32.mrb[0].mxu0
        %v394 = vadd.f32 0.0, %v393
        %v395 = vpop.f32.mrb[0].mxu0
        %396 = vmatprep.mubr.f32.mxu0 0.0
        %397 = vmatmul.mubr.f32.gmra.mrb[0].mxu0 %v295
        %v398 = vpop.f32.mrb[0].mxu0
        %v399 = vadd.f32 0.0, %v398
        %v400 = vpop.f32.mrb[0].mxu0
        %401 = vdwg.mxu0
        %410 = vrot.lane.b32.xlu0 %v364, 112
        %v411 = vpop.permute.xlu0 %410
        %412 = vrot.lane.b32.xlu0 %v369, 112
        %v413 = vpop.permute.xlu0 %412
        %414 = vrot.lane.b32.xlu0 %v374, 112
        %v415 = vpop.permute.xlu0 %414
        %416 = vrot.lane.b32.xlu0 %v379, 112
        %v417 = vpop.permute.xlu0 %416
        %418 = vrot.lane.b32.xlu0 %v384, 112
        %v419 = vpop.permute.xlu0 %418
        %420 = vrot.lane.b32.xlu0 %v389, 112
        %v421 = vpop.permute.xlu0 %420
        %422 = vrot.lane.b32.xlu0 %v394, 112
        %v423 = vpop.permute.xlu0 %422
        %424 = vrot.lane.b32.xlu0 %v399, 112
        %v425 = vpop.permute.xlu0 %424
        %426 = vrot.lane.b32.xlu0 %v364, 96
        %v427 = vpop.permute.xlu0 %426
        %428 = vrot.lane.b32.xlu0 %v369, 96
        %v429 = vpop.permute.xlu0 %428
        %430 = vrot.lane.b32.xlu0 %v374, 96
        %v431 = vpop.permute.xlu0 %430
        %432 = vrot.lane.b32.xlu0 %v379, 96
        %v433 = vpop.permute.xlu0 %432
        %434 = vrot.lane.b32.xlu0 %v384, 96
        %v435 = vpop.permute.xlu0 %434
        %436 = vrot.lane.b32.xlu0 %v389, 96
        %v437 = vpop.permute.xlu0 %436
        %438 = vrot.lane.b32.xlu0 %v394, 96
        %v439 = vpop.permute.xlu0 %438
        %440 = vrot.lane.b32.xlu0 %v399, 96
        %v441 = vpop.permute.xlu0 %440
        %442 = vrot.lane.b32.xlu0 %v364, 80
        %v443 = vpop.permute.xlu0 %442
        %444 = vrot.lane.b32.xlu0 %v369, 80
        %v445 = vpop.permute.xlu0 %444
        %446 = vrot.lane.b32.xlu0 %v374, 80
        %v447 = vpop.permute.xlu0 %446
        %448 = vrot.lane.b32.xlu0 %v379, 80
        %v449 = vpop.permute.xlu0 %448
        %450 = vrot.lane.b32.xlu0 %v384, 80
        %v451 = vpop.permute.xlu0 %450
        %452 = vrot.lane.b32.xlu0 %v389, 80
        %v453 = vpop.permute.xlu0 %452
        %454 = vrot.lane.b32.xlu0 %v394, 80
        %v455 = vpop.permute.xlu0 %454
        %456 = vrot.lane.b32.xlu0 %v399, 80
        %v457 = vpop.permute.xlu0 %456
        %v458 = vld [vmem:[%s258] sm:$0xff]
        %v460 = vsel %vm272, %v458, 0
        %v462 = vsel %vm272, %v364, 0
        %v464 = vsel %vm272, %v411, 0
        %v466 = vsel %vm272, %v427, 0
        %v468 = vsel %vm272, %v443, 0
        %470 = vmatprep.subr.mxu0 0.0
        %471 = vmatpush1.xpose.msra.mxu0 %v462
        %472 = vmatprep.subr.mxu0 0.0
        %473 = vmatpush1.xpose.msra.mxu0 %v464
        %474 = vmatprep.subr.mxu0 0.0
        %475 = vmatpush1.xpose.msra.mxu0 %v466
        %476 = vmatprep.subr.mxu0 0.0
        %477 = vmatpush1.xpose.msra.mxu0 %v468
        %478 = vmatprep.subr.mxu0 0.0
        %479 = vmatpush1.xpose.msra.mxu0 0.0
        %480 = vmatprep.subr.mxu0 0.0
        %481 = vmatpush1.xpose.msra.mxu0 0.0
        %482 = vmatprep.subr.mxu0 0.0
        %483 = vmatpush1.xpose.msra.mxu0 0.0
        %484 = vmatprep.subr.mxu0 0.0
        %485 = vmatpush1.xpose.msra.mxu0 0.0
        %486 = vmatprep.subr.mxu0 0.0
        %487 = vmatpush1.xpose.msra.mxu0 0.0
        %488 = vmatprep.subr.mxu0 0.0
        %489 = vmatpush1.xpose.msra.mxu0 0.0
        %490 = vmatprep.subr.mxu0 0.0
        %491 = vmatpush1.xpose.msra.mxu0 0.0
        %492 = vmatprep.subr.mxu0 0.0
        %493 = vmatpush1.xpose.msra.mxu0 0.0
        %494 = vmatprep.subr.mxu0 0.0
        %495 = vmatpush1.xpose.msra.mxu0 0.0
        %496 = vmatprep.subr.mxu0 0.0
        %497 = vmatpush1.xpose.msra.mxu0 0.0
        %498 = vmatprep.subr.mxu0 0.0
        %499 = vmatpush1.xpose.msra.mxu0 0.0
        %500 = vmatprep.subr.mxu0 0.0
        %501 = vmatpush1.xpose.msra.mxu0 0.0
        %502 = vmatprep.subr.mxu0 0.0
        %503 = vmatpush1.xpose.msra.mxu0 0.0
        %504 = vmatprep.subr.mxu0 0.0
        %505 = vmatpush1.xpose.msra.mxu0 0.0
        %506 = vmatprep.subr.mxu0 0.0
        %507 = vmatpush1.xpose.msra.mxu0 0.0
        %508 = vmatprep.subr.mxu0 0.0
        %509 = vmatpush1.xpose.msra.mxu0 0.0
        %510 = vmatprep.subr.mxu0 0.0
        %511 = vmatpush1.xpose.msra.mxu0 0.0
        %512 = vmatprep.subr.mxu0 0.0
        %513 = vmatpush1.xpose.msra.mxu0 0.0
        %514 = vmatprep.subr.mxu0 0.0
        %515 = vmatpush1.xpose.msra.mxu0 0.0
        %516 = vmatprep.subr.mxu0 0.0
        %517 = vmatpush1.xpose.msra.mxu0 0.0
        %518 = vmatprep.subr.mxu0 0.0
        %519 = vmatpush1.xpose.msra.mxu0 0.0
        %520 = vmatprep.subr.mxu0 0.0
        %521 = vmatpush1.xpose.msra.mxu0 0.0
        %522 = vmatprep.subr.mxu0 0.0
        %523 = vmatpush1.xpose.msra.mxu0 0.0
        %524 = vmatprep.subr.mxu0 0.0
        %525 = vmatpush1.xpose.msra.mxu0 0.0
        %526 = vmatprep.subr.mxu0 0.0
        %527 = vmatpush1.xpose.msra.mxu0 0.0
        %528 = vmatprep.subr.mxu0 0.0
        %529 = vmatpush1.xpose.msra.mxu0 0.0
        %530 = vmatprep.subr.mxu0 0.0
        %531 = vmatpush1.xpose.msra.mxu0 0.0
        %532 = vmatprep.subr.mxu0 0.0
        %533 = vmatpush1.xpose.msra.mxu0 0.0
        %534 = vmatprep.mubr.f32.mxu0 0.0
        %535 = vmatmul.mubr.f32.gmra.mrb[0].mxu0 %v460
        %v536 = vpop.f32.mrb[0].mxu0
        %v537 = vadd.f32 0.0, %v536
        %v538 = vpop.f32.mrb[0].mxu0
        %539 = vdwg.mxu0
        %vm540 = vcmask 261120
        %541 = vst.msk [vmem:[%s247] sm:$0xff] %vm540, %v537
        %s542 = scalar_lea.vmem %s258, 8
        %v543 = vld [vmem:[%s542] sm:$0xff]
        %v545 = vsel %vm272, %v543, 0
        %v547 = vsel %vm272, %v369, 0
        %v549 = vsel %vm272, %v413, 0
        %v551 = vsel %vm272, %v429, 0
        %v553 = vsel %vm272, %v445, 0
        %555 = vmatprep.subr.mxu0 0.0
        %556 = vmatpush1.xpose.msra.mxu0 %v547
        %557 = vmatprep.subr.mxu0 0.0
        %558 = vmatpush1.xpose.msra.mxu0 %v549
        %559 = vmatprep.subr.mxu0 0.0
        %560 = vmatpush1.xpose.msra.mxu0 %v551
        %561 = vmatprep.subr.mxu0 0.0
        %562 = vmatpush1.xpose.msra.mxu0 %v553
        %563 = vmatprep.subr.mxu0 0.0
        %564 = vmatpush1.xpose.msra.mxu0 0.0
        %565 = vmatprep.subr.mxu0 0.0
        %566 = vmatpush1.xpose.msra.mxu0 0.0
        %567 = vmatprep.subr.mxu0 0.0
        %568 = vmatpush1.xpose.msra.mxu0 0.0
        %569 = vmatprep.subr.mxu0 0.0
        %570 = vmatpush1.xpose.msra.mxu0 0.0
        %571 = vmatprep.subr.mxu0 0.0
        %572 = vmatpush1.xpose.msra.mxu0 0.0
        %573 = vmatprep.subr.mxu0 0.0
        %574 = vmatpush1.xpose.msra.mxu0 0.0
        %575 = vmatprep.subr.mxu0 0.0
        %576 = vmatpush1.xpose.msra.mxu0 0.0
        %577 = vmatprep.subr.mxu0 0.0
        %578 = vmatpush1.xpose.msra.mxu0 0.0
        %579 = vmatprep.subr.mxu0 0.0
        %580 = vmatpush1.xpose.msra.mxu0 0.0
        %581 = vmatprep.subr.mxu0 0.0
        %582 = vmatpush1.xpose.msra.mxu0 0.0
        %583 = vmatprep.subr.mxu0 0.0
        %584 = vmatpush1.xpose.msra.mxu0 0.0
        %585 = vmatprep.subr.mxu0 0.0
        %586 = vmatpush1.xpose.msra.mxu0 0.0
        %587 = vmatprep.subr.mxu0 0.0
        %588 = vmatpush1.xpose.msra.mxu0 0.0
        %589 = vmatprep.subr.mxu0 0.0
        %590 = vmatpush1.xpose.msra.mxu0 0.0
        %591 = vmatprep.subr.mxu0 0.0
        %592 = vmatpush1.xpose.msra.mxu0 0.0
        %593 = vmatprep.subr.mxu0 0.0
        %594 = vmatpush1.xpose.msra.mxu0 0.0
        %595 = vmatprep.subr.mxu0 0.0
        %596 = vmatpush1.xpose.msra.mxu0 0.0
        %597 = vmatprep.subr.mxu0 0.0
        %598 = vmatpush1.xpose.msra.mxu0 0.0
        %599 = vmatprep.subr.mxu0 0.0
        %600 = vmatpush1.xpose.msra.mxu0 0.0
        %601 = vmatprep.subr.mxu0 0.0
        %602 = vmatpush1.xpose.msra.mxu0 0.0
        %603 = vmatprep.subr.mxu0 0.0
        %604 = vmatpush1.xpose.msra.mxu0 0.0
        %605 = vmatprep.subr.mxu0 0.0
        %606 = vmatpush1.xpose.msra.mxu0 0.0
        %607 = vmatprep.subr.mxu0 0.0
        %608 = vmatpush1.xpose.msra.mxu0 0.0
        %609 = vmatprep.subr.mxu0 0.0
        %610 = vmatpush1.xpose.msra.mxu0 0.0
        %611 = vmatprep.subr.mxu0 0.0
        %612 = vmatpush1.xpose.msra.mxu0 0.0
        %613 = vmatprep.subr.mxu0 0.0
        %614 = vmatpush1.xpose.msra.mxu0 0.0
        %615 = vmatprep.subr.mxu0 0.0
        %616 = vmatpush1.xpose.msra.mxu0 0.0
        %617 = vmatprep.subr.mxu0 0.0
        %618 = vmatpush1.xpose.msra.mxu0 0.0
        %619 = vmatprep.mubr.f32.mxu0 0.0
        %620 = vmatmul.mubr.f32.gmra.mrb[0].mxu0 %v545
        %v621 = vpop.f32.mrb[0].mxu0
        %v622 = vadd.f32 0.0, %v621
        %v623 = vpop.f32.mrb[0].mxu0
        %624 = vdwg.mxu0
        %s625 = scalar_lea.vmem %s247, 8 [#allocation7]
        %626 = vst.msk [vmem:[%s625] sm:$0xff] %vm540, %v622
        %s627 = scalar_lea.vmem %s258, 16
        %v628 = vld [vmem:[%s627] sm:$0xff]
        %v630 = vsel %vm272, %v628, 0
        %v632 = vsel %vm272, %v374, 0
        %v634 = vsel %vm272, %v415, 0
        %v636 = vsel %vm272, %v431, 0
        %v638 = vsel %vm272, %v447, 0
        %640 = vmatprep.subr.mxu0 0.0
        %641 = vmatpush1.xpose.msra.mxu0 %v632
        %642 = vmatprep.subr.mxu0 0.0
        %643 = vmatpush1.xpose.msra.mxu0 %v634
        %644 = vmatprep.subr.mxu0 0.0
        %645 = vmatpush1.xpose.msra.mxu0 %v636
        %646 = vmatprep.subr.mxu0 0.0
        %647 = vmatpush1.xpose.msra.mxu0 %v638
        %648 = vmatprep.subr.mxu0 0.0
        %649 = vmatpush1.xpose.msra.mxu0 0.0
        %650 = vmatprep.subr.mxu0 0.0
        %651 = vmatpush1.xpose.msra.mxu0 0.0
        %652 = vmatprep.subr.mxu0 0.0
        %653 = vmatpush1.xpose.msra.mxu0 0.0
        %654 = vmatprep.subr.mxu0 0.0
        %655 = vmatpush1.xpose.msra.mxu0 0.0
        %656 = vmatprep.subr.mxu0 0.0
        %657 = vmatpush1.xpose.msra.mxu0 0.0
        %658 = vmatprep.subr.mxu0 0.0
        %659 = vmatpush1.xpose.msra.mxu0 0.0
        %660 = vmatprep.subr.mxu0 0.0
        %661 = vmatpush1.xpose.msra.mxu0 0.0
        %662 = vmatprep.subr.mxu0 0.0
        %663 = vmatpush1.xpose.msra.mxu0 0.0
        %664 = vmatprep.subr.mxu0 0.0
        %665 = vmatpush1.xpose.msra.mxu0 0.0
        %666 = vmatprep.subr.mxu0 0.0
        %667 = vmatpush1.xpose.msra.mxu0 0.0
        %668 = vmatprep.subr.mxu0 0.0
        %669 = vmatpush1.xpose.msra.mxu0 0.0
        %670 = vmatprep.subr.mxu0 0.0
        %671 = vmatpush1.xpose.msra.mxu0 0.0
        %672 = vmatprep.subr.mxu0 0.0
        %673 = vmatpush1.xpose.msra.mxu0 0.0
        %674 = vmatprep.subr.mxu0 0.0
        %675 = vmatpush1.xpose.msra.mxu0 0.0
        %676 = vmatprep.subr.mxu0 0.0
        %677 = vmatpush1.xpose.msra.mxu0 0.0
        %678 = vmatprep.subr.mxu0 0.0
        %679 = vmatpush1.xpose.msra.mxu0 0.0
        %680 = vmatprep.subr.mxu0 0.0
        %681 = vmatpush1.xpose.msra.mxu0 0.0
        %682 = vmatprep.subr.mxu0 0.0
        %683 = vmatpush1.xpose.msra.mxu0 0.0
        %684 = vmatprep.subr.mxu0 0.0
        %685 = vmatpush1.xpose.msra.mxu0 0.0
        %686 = vmatprep.subr.mxu0 0.0
        %687 = vmatpush1.xpose.msra.mxu0 0.0
        %688 = vmatprep.subr.mxu0 0.0
        %689 = vmatpush1.xpose.msra.mxu0 0.0
        %690 = vmatprep.subr.mxu0 0.0
        %691 = vmatpush1.xpose.msra.mxu0 0.0
        %692 = vmatprep.subr.mxu0 0.0
        %693 = vmatpush1.xpose.msra.mxu0 0.0
        %694 = vmatprep.subr.mxu0 0.0
        %695 = vmatpush1.xpose.msra.mxu0 0.0
        %696 = vmatprep.subr.mxu0 0.0
        %697 = vmatpush1.xpose.msra.mxu0 0.0
        %698 = vmatprep.subr.mxu0 0.0
        %699 = vmatpush1.xpose.msra.mxu0 0.0
        %700 = vmatprep.subr.mxu0 0.0
        %701 = vmatpush1.xpose.msra.mxu0 0.0
        %702 = vmatprep.subr.mxu0 0.0
        %703 = vmatpush1.xpose.msra.mxu0 0.0
        %704 = vmatprep.mubr.f32.mxu0 0.0
        %705 = vmatmul.mubr.f32.gmra.mrb[0].mxu0 %v630
        %v706 = vpop.f32.mrb[0].mxu0
        %v707 = vadd.f32 0.0, %v706
        %v708 = vpop.f32.mrb[0].mxu0
        %709 = vdwg.mxu0
        %s710 = scalar_lea.vmem %s247, 16 [#allocation7]
        %711 = vst.msk [vmem:[%s710] sm:$0xff] %vm540, %v707
        %s712 = scalar_lea.vmem %s258, 24
        %v713 = vld [vmem:[%s712] sm:$0xff]
        %v715 = vsel %vm272, %v713, 0
        %v717 = vsel %vm272, %v379, 0
        %v719 = vsel %vm272, %v417, 0
        %v721 = vsel %vm272, %v433, 0
        %v723 = vsel %vm272, %v449, 0
        %725 = vmatprep.subr.mxu0 0.0
        %726 = vmatpush1.xpose.msra.mxu0 %v717
        %727 = vmatprep.subr.mxu0 0.0
        %728 = vmatpush1.xpose.msra.mxu0 %v719
        %729 = vmatprep.subr.mxu0 0.0
        %730 = vmatpush1.xpose.msra.mxu0 %v721
        %731 = vmatprep.subr.mxu0 0.0
        %732 = vmatpush1.xpose.msra.mxu0 %v723
        %733 = vmatprep.subr.mxu0 0.0
        %734 = vmatpush1.xpose.msra.mxu0 0.0
        %735 = vmatprep.subr.mxu0 0.0
        %736 = vmatpush1.xpose.msra.mxu0 0.0
        %737 = vmatprep.subr.mxu0 0.0
        %738 = vmatpush1.xpose.msra.mxu0 0.0
        %739 = vmatprep.subr.mxu0 0.0
        %740 = vmatpush1.xpose.msra.mxu0 0.0
        %741 = vmatprep.subr.mxu0 0.0
        %742 = vmatpush1.xpose.msra.mxu0 0.0
        %743 = vmatprep.subr.mxu0 0.0
        %744 = vmatpush1.xpose.msra.mxu0 0.0
        %745 = vmatprep.subr.mxu0 0.0
        %746 = vmatpush1.xpose.msra.mxu0 0.0
        %747 = vmatprep.subr.mxu0 0.0
        %748 = vmatpush1.xpose.msra.mxu0 0.0
        %749 = vmatprep.subr.mxu0 0.0
        %750 = vmatpush1.xpose.msra.mxu0 0.0
        %751 = vmatprep.subr.mxu0 0.0
        %752 = vmatpush1.xpose.msra.mxu0 0.0
        %753 = vmatprep.subr.mxu0 0.0
        %754 = vmatpush1.xpose.msra.mxu0 0.0
        %755 = vmatprep.subr.mxu0 0.0
        %756 = vmatpush1.xpose.msra.mxu0 0.0
        %757 = vmatprep.subr.mxu0 0.0
        %758 = vmatpush1.xpose.msra.mxu0 0.0
        %759 = vmatprep.subr.mxu0 0.0
        %760 = vmatpush1.xpose.msra.mxu0 0.0
        %761 = vmatprep.subr.mxu0 0.0
        %762 = vmatpush1.xpose.msra.mxu0 0.0
        %763 = vmatprep.subr.mxu0 0.0
        %764 = vmatpush1.xpose.msra.mxu0 0.0
        %765 = vmatprep.subr.mxu0 0.0
        %766 = vmatpush1.xpose.msra.mxu0 0.0
        %767 = vmatprep.subr.mxu0 0.0
        %768 = vmatpush1.xpose.msra.mxu0 0.0
        %769 = vmatprep.subr.mxu0 0.0
        %770 = vmatpush1.xpose.msra.mxu0 0.0
        %771 = vmatprep.subr.mxu0 0.0
        %772 = vmatpush1.xpose.msra.mxu0 0.0
        %773 = vmatprep.subr.mxu0 0.0
        %774 = vmatpush1.xpose.msra.mxu0 0.0
        %775 = vmatprep.subr.mxu0 0.0
        %776 = vmatpush1.xpose.msra.mxu0 0.0
        %777 = vmatprep.subr.mxu0 0.0
        %778 = vmatpush1.xpose.msra.mxu0 0.0
        %779 = vmatprep.subr.mxu0 0.0
        %780 = vmatpush1.xpose.msra.mxu0 0.0
        %781 = vmatprep.subr.mxu0 0.0
        %782 = vmatpush1.xpose.msra.mxu0 0.0
        %783 = vmatprep.subr.mxu0 0.0
        %784 = vmatpush1.xpose.msra.mxu0 0.0
        %785 = vmatprep.subr.mxu0 0.0
        %786 = vmatpush1.xpose.msra.mxu0 0.0
        %787 = vmatprep.subr.mxu0 0.0
        %788 = vmatpush1.xpose.msra.mxu0 0.0
        %789 = vmatprep.mubr.f32.mxu0 0.0
        %790 = vmatmul.mubr.f32.gmra.mrb[0].mxu0 %v715
        %v791 = vpop.f32.mrb[0].mxu0
        %v792 = vadd.f32 0.0, %v791
        %v793 = vpop.f32.mrb[0].mxu0
        %794 = vdwg.mxu0
        %s795 = scalar_lea.vmem %s247, 24 [#allocation7]
        %796 = vst.msk [vmem:[%s795] sm:$0xff] %vm540, %v792
        %s797 = scalar_lea.vmem %s258, 32
        %v798 = vld [vmem:[%s797] sm:$0xff]
        %v800 = vsel %vm272, %v798, 0
        %v802 = vsel %vm272, %v384, 0
        %v804 = vsel %vm272, %v419, 0
        %v806 = vsel %vm272, %v435, 0
        %v808 = vsel %vm272, %v451, 0
        %810 = vmatprep.subr.mxu0 0.0
        %811 = vmatpush1.xpose.msra.mxu0 %v802
        %812 = vmatprep.subr.mxu0 0.0
        %813 = vmatpush1.xpose.msra.mxu0 %v804
        %814 = vmatprep.subr.mxu0 0.0
        %815 = vmatpush1.xpose.msra.mxu0 %v806
        %816 = vmatprep.subr.mxu0 0.0
        %817 = vmatpush1.xpose.msra.mxu0 %v808
        %818 = vmatprep.subr.mxu0 0.0
        %819 = vmatpush1.xpose.msra.mxu0 0.0
        %820 = vmatprep.subr.mxu0 0.0
        %821 = vmatpush1.xpose.msra.mxu0 0.0
        %822 = vmatprep.subr.mxu0 0.0
        %823 = vmatpush1.xpose.msra.mxu0 0.0
        %824 = vmatprep.subr.mxu0 0.0
        %825 = vmatpush1.xpose.msra.mxu0 0.0
        %826 = vmatprep.subr.mxu0 0.0
        %827 = vmatpush1.xpose.msra.mxu0 0.0
        %828 = vmatprep.subr.mxu0 0.0
        %829 = vmatpush1.xpose.msra.mxu0 0.0
        %830 = vmatprep.subr.mxu0 0.0
        %831 = vmatpush1.xpose.msra.mxu0 0.0
        %832 = vmatprep.subr.mxu0 0.0
        %833 = vmatpush1.xpose.msra.mxu0 0.0
        %834 = vmatprep.subr.mxu0 0.0
        %835 = vmatpush1.xpose.msra.mxu0 0.0
        %836 = vmatprep.subr.mxu0 0.0
        %837 = vmatpush1.xpose.msra.mxu0 0.0
        %838 = vmatprep.subr.mxu0 0.0
        %839 = vmatpush1.xpose.msra.mxu0 0.0
        %840 = vmatprep.subr.mxu0 0.0
        %841 = vmatpush1.xpose.msra.mxu0 0.0
        %842 = vmatprep.subr.mxu0 0.0
        %843 = vmatpush1.xpose.msra.mxu0 0.0
        %844 = vmatprep.subr.mxu0 0.0
        %845 = vmatpush1.xpose.msra.mxu0 0.0
        %846 = vmatprep.subr.mxu0 0.0
        %847 = vmatpush1.xpose.msra.mxu0 0.0
        %848 = vmatprep.subr.mxu0 0.0
        %849 = vmatpush1.xpose.msra.mxu0 0.0
        %850 = vmatprep.subr.mxu0 0.0
        %851 = vmatpush1.xpose.msra.mxu0 0.0
        %852 = vmatprep.subr.mxu0 0.0
        %853 = vmatpush1.xpose.msra.mxu0 0.0
        %854 = vmatprep.subr.mxu0 0.0
        %855 = vmatpush1.xpose.msra.mxu0 0.0
        %856 = vmatprep.subr.mxu0 0.0
        %857 = vmatpush1.xpose.msra.mxu0 0.0
        %858 = vmatprep.subr.mxu0 0.0
        %859 = vmatpush1.xpose.msra.mxu0 0.0
        %860 = vmatprep.subr.mxu0 0.0
        %861 = vmatpush1.xpose.msra.mxu0 0.0
        %862 = vmatprep.subr.mxu0 0.0
        %863 = vmatpush1.xpose.msra.mxu0 0.0
        %864 = vmatprep.subr.mxu0 0.0
        %865 = vmatpush1.xpose.msra.mxu0 0.0
        %866 = vmatprep.subr.mxu0 0.0
        %867 = vmatpush1.xpose.msra.mxu0 0.0
        %868 = vmatprep.subr.mxu0 0.0
        %869 = vmatpush1.xpose.msra.mxu0 0.0
        %870 = vmatprep.subr.mxu0 0.0
        %871 = vmatpush1.xpose.msra.mxu0 0.0
        %872 = vmatprep.subr.mxu0 0.0
        %873 = vmatpush1.xpose.msra.mxu0 0.0
        %874 = vmatprep.mubr.f32.mxu0 0.0
        %875 = vmatmul.mubr.f32.gmra.mrb[0].mxu0 %v800
        %v876 = vpop.f32.mrb[0].mxu0
        %v877 = vadd.f32 0.0, %v876
        %v878 = vpop.f32.mrb[0].mxu0
        %879 = vdwg.mxu0
        %s880 = scalar_lea.vmem %s247, 32 [#allocation7]
        %881 = vst.msk [vmem:[%s880] sm:$0xff] %vm540, %v877
        %s882 = scalar_lea.vmem %s258, 40
        %v883 = vld [vmem:[%s882] sm:$0xff]
        %v885 = vsel %vm272, %v883, 0
        %v887 = vsel %vm272, %v389, 0
        %v889 = vsel %vm272, %v421, 0
        %v891 = vsel %vm272, %v437, 0
        %v893 = vsel %vm272, %v453, 0
        %895 = vmatprep.subr.mxu0 0.0
        %896 = vmatpush1.xpose.msra.mxu0 %v887
        %897 = vmatprep.subr.mxu0 0.0
        %898 = vmatpush1.xpose.msra.mxu0 %v889
        %899 = vmatprep.subr.mxu0 0.0
        %900 = vmatpush1.xpose.msra.mxu0 %v891
        %901 = vmatprep.subr.mxu0 0.0
        %902 = vmatpush1.xpose.msra.mxu0 %v893
        %903 = vmatprep.subr.mxu0 0.0
        %904 = vmatpush1.xpose.msra.mxu0 0.0
        %905 = vmatprep.subr.mxu0 0.0
        %906 = vmatpush1.xpose.msra.mxu0 0.0
        %907 = vmatprep.subr.mxu0 0.0
        %908 = vmatpush1.xpose.msra.mxu0 0.0
        %909 = vmatprep.subr.mxu0 0.0
        %910 = vmatpush1.xpose.msra.mxu0 0.0
        %911 = vmatprep.subr.mxu0 0.0
        %912 = vmatpush1.xpose.msra.mxu0 0.0
        %913 = vmatprep.subr.mxu0 0.0
        %914 = vmatpush1.xpose.msra.mxu0 0.0
        %915 = vmatprep.subr.mxu0 0.0
        %916 = vmatpush1.xpose.msra.mxu0 0.0
        %917 = vmatprep.subr.mxu0 0.0
        %918 = vmatpush1.xpose.msra.mxu0 0.0
        %919 = vmatprep.subr.mxu0 0.0
        %920 = vmatpush1.xpose.msra.mxu0 0.0
        %921 = vmatprep.subr.mxu0 0.0
        %922 = vmatpush1.xpose.msra.mxu0 0.0
        %923 = vmatprep.subr.mxu0 0.0
        %924 = vmatpush1.xpose.msra.mxu0 0.0
        %925 = vmatprep.subr.mxu0 0.0
        %926 = vmatpush1.xpose.msra.mxu0 0.0
        %927 = vmatprep.subr.mxu0 0.0
        %928 = vmatpush1.xpose.msra.mxu0 0.0
        %929 = vmatprep.subr.mxu0 0.0
        %930 = vmatpush1.xpose.msra.mxu0 0.0
        %931 = vmatprep.subr.mxu0 0.0
        %932 = vmatpush1.xpose.msra.mxu0 0.0
        %933 = vmatprep.subr.mxu0 0.0
        %934 = vmatpush1.xpose.msra.mxu0 0.0
        %935 = vmatprep.subr.mxu0 0.0
        %936 = vmatpush1.xpose.msra.mxu0 0.0
        %937 = vmatprep.subr.mxu0 0.0
        %938 = vmatpush1.xpose.msra.mxu0 0.0
        %939 = vmatprep.subr.mxu0 0.0
        %940 = vmatpush1.xpose.msra.mxu0 0.0
        %941 = vmatprep.subr.mxu0 0.0
        %942 = vmatpush1.xpose.msra.mxu0 0.0
        %943 = vmatprep.subr.mxu0 0.0
        %944 = vmatpush1.xpose.msra.mxu0 0.0
        %945 = vmatprep.subr.mxu0 0.0
        %946 = vmatpush1.xpose.msra.mxu0 0.0
        %947 = vmatprep.subr.mxu0 0.0
        %948 = vmatpush1.xpose.msra.mxu0 0.0
        %949 = vmatprep.subr.mxu0 0.0
        %950 = vmatpush1.xpose.msra.mxu0 0.0
        %951 = vmatprep.subr.mxu0 0.0
        %952 = vmatpush1.xpose.msra.mxu0 0.0
        %953 = vmatprep.subr.mxu0 0.0
        %954 = vmatpush1.xpose.msra.mxu0 0.0
        %955 = vmatprep.subr.mxu0 0.0
        %956 = vmatpush1.xpose.msra.mxu0 0.0
        %957 = vmatprep.subr.mxu0 0.0
        %958 = vmatpush1.xpose.msra.mxu0 0.0
        %959 = vmatprep.mubr.f32.mxu0 0.0
        %960 = vmatmul.mubr.f32.gmra.mrb[0].mxu0 %v885
        %v961 = vpop.f32.mrb[0].mxu0
        %v962 = vadd.f32 0.0, %v961
        %v963 = vpop.f32.mrb[0].mxu0
        %964 = vdwg.mxu0
        %s965 = scalar_lea.vmem %s247, 40 [#allocation7]
        %966 = vst.msk [vmem:[%s965] sm:$0xff] %vm540, %v962
        %s967 = scalar_lea.vmem %s258, 48
        %v968 = vld [vmem:[%s967] sm:$0xff]
        %v970 = vsel %vm272, %v968, 0
        %v972 = vsel %vm272, %v394, 0
        %v974 = vsel %vm272, %v423, 0
        %v976 = vsel %vm272, %v439, 0
        %v978 = vsel %vm272, %v455, 0
        %980 = vmatprep.subr.mxu0 0.0
        %981 = vmatpush1.xpose.msra.mxu0 %v972
        %982 = vmatprep.subr.mxu0 0.0
        %983 = vmatpush1.xpose.msra.mxu0 %v974
        %984 = vmatprep.subr.mxu0 0.0
        %985 = vmatpush1.xpose.msra.mxu0 %v976
        %986 = vmatprep.subr.mxu0 0.0
        %987 = vmatpush1.xpose.msra.mxu0 %v978
        %988 = vmatprep.subr.mxu0 0.0
        %989 = vmatpush1.xpose.msra.mxu0 0.0
        %990 = vmatprep.subr.mxu0 0.0
        %991 = vmatpush1.xpose.msra.mxu0 0.0
        %992 = vmatprep.subr.mxu0 0.0
        %993 = vmatpush1.xpose.msra.mxu0 0.0
        %994 = vmatprep.subr.mxu0 0.0
        %995 = vmatpush1.xpose.msra.mxu0 0.0
        %996 = vmatprep.subr.mxu0 0.0
        %997 = vmatpush1.xpose.msra.mxu0 0.0
        %998 = vmatprep.subr.mxu0 0.0
        %999 = vmatpush1.xpose.msra.mxu0 0.0
        %1000 = vmatprep.subr.mxu0 0.0
        %1001 = vmatpush1.xpose.msra.mxu0 0.0
        %1002 = vmatprep.subr.mxu0 0.0
        %1003 = vmatpush1.xpose.msra.mxu0 0.0
        %1004 = vmatprep.subr.mxu0 0.0
        %1005 = vmatpush1.xpose.msra.mxu0 0.0
        %1006 = vmatprep.subr.mxu0 0.0
        %1007 = vmatpush1.xpose.msra.mxu0 0.0
        %1008 = vmatprep.subr.mxu0 0.0
        %1009 = vmatpush1.xpose.msra.mxu0 0.0
        %1010 = vmatprep.subr.mxu0 0.0
        %1011 = vmatpush1.xpose.msra.mxu0 0.0
        %1012 = vmatprep.subr.mxu0 0.0
        %1013 = vmatpush1.xpose.msra.mxu0 0.0
        %1014 = vmatprep.subr.mxu0 0.0
        %1015 = vmatpush1.xpose.msra.mxu0 0.0
        %1016 = vmatprep.subr.mxu0 0.0
        %1017 = vmatpush1.xpose.msra.mxu0 0.0
        %1018 = vmatprep.subr.mxu0 0.0
        %1019 = vmatpush1.xpose.msra.mxu0 0.0
        %1020 = vmatprep.subr.mxu0 0.0
        %1021 = vmatpush1.xpose.msra.mxu0 0.0
        %1022 = vmatprep.subr.mxu0 0.0
        %1023 = vmatpush1.xpose.msra.mxu0 0.0
        %1024 = vmatprep.subr.mxu0 0.0
        %1025 = vmatpush1.xpose.msra.mxu0 0.0
        %1026 = vmatprep.subr.mxu0 0.0
        %1027 = vmatpush1.xpose.msra.mxu0 0.0
        %1028 = vmatprep.subr.mxu0 0.0
        %1029 = vmatpush1.xpose.msra.mxu0 0.0
        %1030 = vmatprep.subr.mxu0 0.0
        %1031 = vmatpush1.xpose.msra.mxu0 0.0
        %1032 = vmatprep.subr.mxu0 0.0
        %1033 = vmatpush1.xpose.msra.mxu0 0.0
        %1034 = vmatprep.subr.mxu0 0.0
        %1035 = vmatpush1.xpose.msra.mxu0 0.0
        %1036 = vmatprep.subr.mxu0 0.0
        %1037 = vmatpush1.xpose.msra.mxu0 0.0
        %1038 = vmatprep.subr.mxu0 0.0
        %1039 = vmatpush1.xpose.msra.mxu0 0.0
        %1040 = vmatprep.subr.mxu0 0.0
        %1041 = vmatpush1.xpose.msra.mxu0 0.0
        %1042 = vmatprep.subr.mxu0 0.0
        %1043 = vmatpush1.xpose.msra.mxu0 0.0
        %1044 = vmatprep.mubr.f32.mxu0 0.0
        %1045 = vmatmul.mubr.f32.gmra.mrb[0].mxu0 %v970
        %v1046 = vpop.f32.mrb[0].mxu0
        %v1047 = vadd.f32 0.0, %v1046
        %v1048 = vpop.f32.mrb[0].mxu0
        %1049 = vdwg.mxu0
        %s1050 = scalar_lea.vmem %s247, 48 [#allocation7]
        %1051 = vst.msk [vmem:[%s1050] sm:$0xff] %vm540, %v1047
        %s1052 = scalar_lea.vmem %s258, 56
        %v1053 = vld [vmem:[%s1052] sm:$0xff]
        %v1055 = vsel %vm272, %v1053, 0
        %v1057 = vsel %vm272, %v399, 0
        %v1059 = vsel %vm272, %v425, 0
        %v1061 = vsel %vm272, %v441, 0
        %v1063 = vsel %vm272, %v457, 0
        %1065 = vmatprep.subr.mxu0 0.0
        %1066 = vmatpush1.xpose.msra.mxu0 %v1057
        %1067 = vmatprep.subr.mxu0 0.0
        %1068 = vmatpush1.xpose.msra.mxu0 %v1059
        %1069 = vmatprep.subr.mxu0 0.0
        %1070 = vmatpush1.xpose.msra.mxu0 %v1061
        %1071 = vmatprep.subr.mxu0 0.0
        %1072 = vmatpush1.xpose.msra.mxu0 %v1063
        %1073 = vmatprep.subr.mxu0 0.0
        %1074 = vmatpush1.xpose.msra.mxu0 0.0
        %1075 = vmatprep.subr.mxu0 0.0
        %1076 = vmatpush1.xpose.msra.mxu0 0.0
        %1077 = vmatprep.subr.mxu0 0.0
        %1078 = vmatpush1.xpose.msra.mxu0 0.0
        %1079 = vmatprep.subr.mxu0 0.0
        %1080 = vmatpush1.xpose.msra.mxu0 0.0
        %1081 = vmatprep.subr.mxu0 0.0
        %1082 = vmatpush1.xpose.msra.mxu0 0.0
        %1083 = vmatprep.subr.mxu0 0.0
        %1084 = vmatpush1.xpose.msra.mxu0 0.0
        %1085 = vmatprep.subr.mxu0 0.0
        %1086 = vmatpush1.xpose.msra.mxu0 0.0
        %1087 = vmatprep.subr.mxu0 0.0
        %1088 = vmatpush1.xpose.msra.mxu0 0.0
        %1089 = vmatprep.subr.mxu0 0.0
        %1090 = vmatpush1.xpose.msra.mxu0 0.0
        %1091 = vmatprep.subr.mxu0 0.0
        %1092 = vmatpush1.xpose.msra.mxu0 0.0
        %1093 = vmatprep.subr.mxu0 0.0
        %1094 = vmatpush1.xpose.msra.mxu0 0.0
        %1095 = vmatprep.subr.mxu0 0.0
        %1096 = vmatpush1.xpose.msra.mxu0 0.0
        %1097 = vmatprep.subr.mxu0 0.0
        %1098 = vmatpush1.xpose.msra.mxu0 0.0
        %1099 = vmatprep.subr.mxu0 0.0
        %1100 = vmatpush1.xpose.msra.mxu0 0.0
        %1101 = vmatprep.subr.mxu0 0.0
        %1102 = vmatpush1.xpose.msra.mxu0 0.0
        %1103 = vmatprep.subr.mxu0 0.0
        %1104 = vmatpush1.xpose.msra.mxu0 0.0
        %1105 = vmatprep.subr.mxu0 0.0
        %1106 = vmatpush1.xpose.msra.mxu0 0.0
        %1107 = vmatprep.subr.mxu0 0.0
        %1108 = vmatpush1.xpose.msra.mxu0 0.0
        %1109 = vmatprep.subr.mxu0 0.0
        %1110 = vmatpush1.xpose.msra.mxu0 0.0
        %1111 = vmatprep.subr.mxu0 0.0
        %1112 = vmatpush1.xpose.msra.mxu0 0.0
        %1113 = vmatprep.subr.mxu0 0.0
        %1114 = vmatpush1.xpose.msra.mxu0 0.0
        %1115 = vmatprep.subr.mxu0 0.0
        %1116 = vmatpush1.xpose.msra.mxu0 0.0
        %1117 = vmatprep.subr.mxu0 0.0
        %1118 = vmatpush1.xpose.msra.mxu0 0.0
        %1119 = vmatprep.subr.mxu0 0.0
        %1120 = vmatpush1.xpose.msra.mxu0 0.0
        %1121 = vmatprep.subr.mxu0 0.0
        %1122 = vmatpush1.xpose.msra.mxu0 0.0
        %1123 = vmatprep.subr.mxu0 0.0
        %1124 = vmatpush1.xpose.msra.mxu0 0.0
        %1125 = vmatprep.subr.mxu0 0.0
        %1126 = vmatpush1.xpose.msra.mxu0 0.0
        %1127 = vmatprep.subr.mxu0 0.0
        %1128 = vmatpush1.xpose.msra.mxu0 0.0
        %1129 = vmatprep.mubr.f32.mxu0 0.0
        %1130 = vmatmul.mubr.f32.gmra.mrb[0].mxu0 %v1055
        %v1131 = vpop.f32.mrb[0].mxu0
        %v1132 = vadd.f32 0.0, %v1131
        %v1133 = vpop.f32.mrb[0].mxu0
        %1134 = vdwg.mxu0
        %s1135 = scalar_lea.vmem %s247, 56 [#allocation7]
        %1136 = vst.msk [vmem:[%s1135] sm:$0xff] %vm540, %v1132
        %s1137 = sand.u32 %s131, 1
        %s1138 = scalar_lea.sflag [#allocation6], %s1137
        %s1139 = sand.u32 %s131, 1
        %s1140 = smul.addr %s1139, 64
        %s1141 = scalar_lea.vmem [#allocation7], %s1140
        // Predicated region
        $region37: #{tpu_custom_call.1} parent=31 // pred_check
          %p1142 = pneg %p141
        $region38: #{tpu_custom_call.1} parent=31 // pred_check_branch
          %1144 = sbr.rel (%p1142) target = $region40
        $region39: #{tpu_custom_call.1} parent=31 // pred_region
          %s1145 = smul.u32 8, %s31
          %s1147 = ssub.s32 1024, 1024
          %1148 = vsyncadd %s1138, %s1147
          %s1149 = sadd.s32 %s32, %s1145
          %s1150 = smul.addr %s1149, 128
          %s1151 = scalar_lea.hbm %s4, %s1150
          %s1152 = sshll.u32 %s1141, 4
          %s1153 = int_to_ptr.vmem [resolvable:$true] %s1152
          %1158 = dma.vmem_to_hbm [thread:$0]  %s1153, 1024, %s1151, %s1138, 128, 128, 8
        $region40: #{tpu_custom_call.1} parent=31 // pred_fallthru
          _
      $region32: #{tpu_custom_call.1} parent=5 // pred_fallthru
        _
      %p1159 = scmp.le.s32.totalorder 2, %s22
      // Predicated region
      $region41: #{tpu_custom_call.1} parent=5 // pred_check
        %p1160 = pneg %p1159
      $region42: #{tpu_custom_call.1} parent=5 // pred_check_branch
        %1162 = sbr.rel (%p1160) target = $region44
      $region43: #{tpu_custom_call.1} parent=5 // pred_region
        %s1163 = ssub.s32 %s22, 2
        // Predicated region
        $region45: #{tpu_custom_call.1} parent=43 // pred_check
          %p1164 = pneg %p147
        $region46: #{tpu_custom_call.1} parent=43 // pred_check_branch
          %1166 = sbr.rel (%p1164) target = $region48
        $region47: #{tpu_custom_call.1} parent=43 // pred_region
          %s1167 = sand.u32 %s132, 1
          %s1168 = scalar_lea.sflag [#allocation6], %s1167
          %s1169 = sand.u32 %s132, 1
          %s1170 = smul.addr %s1169, 64
          %s1171 = scalar_lea.vmem [#allocation7], %s1170
          %1172 = dma.done %s1168, 1024
        $region48: #{tpu_custom_call.1} parent=43 // pred_fallthru
          _
      $region44: #{tpu_custom_call.1} parent=5 // pred_fallthru
        _
    $region6: #{tpu_custom_call.1} parent=1 // loop_footer
      %s26 = sadd.s32 1, %s22
    $region7: #{tpu_custom_call.1} parent=1 // loop_footer_branch
      %21 = sbr.rel target = $region3
    $region8: #{tpu_custom_call.1} parent=1 // loop_exit
      _
    %1173 = vsyncpa [#allocation5], 1
    %s1174 = scalar_lea.sflag [#allocation5], 1
    %1175 = vsyncpa %s1174, 1
    %1176 = vsyncpa [#allocation6], 1
    %s1177 = scalar_lea.sflag [#allocation6], 1
    %1178 = vsyncpa %s1177, 1

</llo_original>
